<compile_context>
chip_gen: v5e
topology: v5e:2x2
jax: 0.10.0
libtpu: 0.0.40
codegen_flags: <defaults>
</compile_context>

<pallas_src>
import math

import jax
import jax.numpy as jnp
import numpy as np
from jax.experimental import pallas as pl
from jax.experimental.pallas import tpu as pltpu

# ---- module hyper-params (from params dict in __init__) ---------------------
NODE_HIDDEN_DIM = 32           # params['molgraph_node_hidden_dim']
MOL_REPR_DIM = 32              # params['mol_repr_dim']
HIDDEN_LAYERS = (64, 64)       # params['hidden_layers'] (Linear+ReLU per layer)

_MIN_PALLAS_NODES = 512        # below this, XLA fuses the tiny MLP better


def _round_up(x, m):
    return ((x + m - 1) // m) * m


def _choose_tile(num_nodes):
    # Big tiles amortize the ~0.35us per-grid-step overhead; keep >= 2 steps
    # so the single "parallel" axis can shard across v7x's two TensorCores.
    tile = 128
    for t in (2048, 1024, 512, 256):
        if num_nodes >= 2 * t:
            tile = t
            break
    # Prefer an even number of grid steps (balanced TC split on v7x) when the
    # smaller tile does not increase padded work.
    steps = -(-num_nodes // tile)
    if steps % 2 == 1 and tile > 256:
        half = tile // 2
        if (-(-num_nodes // half)) % 2 == 0:
            tile = half
    return tile


def _mlp_kernel(x_ref, wcat_ref, w1t_ref, b1_ref, w2_ref, b2_ref, o_ref):
    # x_ref   : (d_cat, tile) bf16  = [node feats ; one-hot attachment rows]
    # wcat_ref: (h1, d_cat)   bf16  = [W0_node^T | contrib^T]  (b0 folded in)
    # w1t_ref : (h2, h1)      bf16  = W1^T
    # b1_ref  : (h2, 1) f32 ; w2_ref : (h2, 1) f32 ; b2_ref : (1, 1) f32
    # o_ref   : (1, tile)     f32   (lane-dense output block)

    # layer 0 (fused node + attachment-gather matmul) + ReLU
    h = jnp.dot(wcat_ref[...], x_ref[...],
                preferred_element_type=jnp.float32)            # (h1, tile) f32
    h = jnp.maximum(h, 0.0)

    # layer 1: Linear + ReLU (bf16 MXU operands, f32 accumulate / elementwise)
    h = jnp.dot(w1t_ref[...], h.astype(jnp.bfloat16),
                preferred_element_type=jnp.float32)            # (h2, tile) f32
    h = jnp.maximum(h + b1_ref[...], 0.0)

    # output layer (h2 -> 1): VPU multiply + sublane reduction, then sigmoid.
    # The result is already lane-dense, so stores/DMA write only real bytes.
    y = jnp.sum(h * w2_ref[...], axis=0, keepdims=True) + b2_ref[...]  # (1, tile)
    o_ref[...] = jax.nn.sigmoid(y)


def init_params(key):
    """Deterministic PyTorch-Linear-style init (uniform +-1/sqrt(fan_in))."""
    d_in = NODE_HIDDEN_DIM + 2 * MOL_REPR_DIM
    dims = [d_in] + list(HIDDEN_LAYERS) + [1]
    params = []
    for fi, fo in zip(dims[:-1], dims[1:]):
        key, kw, kb = jax.random.split(key, 3)
        bound = 1.0 / math.sqrt(fi)
        w = jax.random.uniform(kw, (fi, fo), jnp.float32, -bound, bound)
        b = jax.random.uniform(kb, (1, fo), jnp.float32, -bound, bound)
        params.extend([w, b])
    return tuple(params)


def reference(params, node_hiddens, batch_indices, c2_molreprs, tgt_molreprs):
    """Pure-XLA forward (also used as the small-n fast path)."""
    w0, b0, w1, b1, w2, b2 = params
    x = jnp.concatenate([node_hiddens,
                         jnp.take(c2_molreprs, batch_indices, axis=0),
                         jnp.take(tgt_molreprs, batch_indices, axis=0)], axis=1)
    h = jnp.maximum(x @ w0 + b0, 0.0)
    h = jnp.maximum(h @ w1 + b1, 0.0)
    y = jax.nn.sigmoid(h @ w2 + b2)
    return y[:, 0]


def select_attachment_atom_forward(params, cluster1_node_hiddens,
                                   cluster1_batch_indices, cluster2_molreprs,
                                   target_molreprs):
    assert cluster1_batch_indices.ndim == 1
    w0, b0, w1, b1, w2, b2 = params
    num_nodes = cluster1_node_hiddens.shape[0]
    num_att = cluster2_molreprs.shape[0]
    d_node = cluster1_node_hiddens.shape[1]
    d_mol = cluster2_molreprs.shape[1]
    h1 = w0.shape[1]
    h2 = w1.shape[1]

    # Small-n fallback: pallas_call fixed cost + padding dominates below ~512
    # nodes; XLA fuses this tiny MLP in one pass.
    if num_nodes < _MIN_PALLAS_NODES:
        return reference(params, cluster1_node_hiddens, cluster1_batch_indices,
                         cluster2_molreprs, target_molreprs)

    # Per-attachment layer-0 contribution (+ b0): tiny (num_att, h1) table.
    contrib = (cluster2_molreprs.astype(jnp.float32) @ w0[d_node:d_node + d_mol]
               + target_molreprs.astype(jnp.float32) @ w0[d_node + d_mol:]
               + b0)                                      # (num_att, h1) f32
    att_pad = _round_up(max(num_att, 1), 16)
    contrib = jnp.pad(contrib, ((0, att_pad - num_att), (0, 0)))
    d_cat = d_node + att_pad

    # Fused layer-0 weight: [W0_node^T | contrib^T] -> (h1, d_cat) bf16.
    wcat = jnp.concatenate([w0[:d_node].T, contrib.T],
                           axis=1).astype(jnp.bfloat16)

    tile = _choose_tile(num_nodes)
    n_pad = _round_up(num_nodes, tile)

    # Fused, feature-major kernel input: [node feats ; one-hot rows], bf16.
    idx = jnp.pad(cluster1_batch_indices.astype(jnp.int32),
                  (0, n_pad - num_nodes))
    onehot = (jnp.arange(att_pad, dtype=jnp.int32)[:, None] == idx[None, :])
    x_cat = jnp.concatenate(
        [jnp.pad(cluster1_node_hiddens,
                 ((0, n_pad - num_nodes), (0, 0))).T.astype(jnp.bfloat16),
         onehot.astype(jnp.bfloat16)], axis=0)            # (d_cat, n_pad) bf16

    out = pl.pallas_call(
        _mlp_kernel,
        out_shape=jax.ShapeDtypeStruct((1, n_pad), jnp.float32),
        grid_spec=pltpu.PrefetchScalarGridSpec(
            num_scalar_prefetch=0,
            grid=(n_pad // tile,),
            in_specs=[
                pl.BlockSpec((d_cat, tile), lambda i: (0, i)),  # streamed input
                pl.BlockSpec((h1, d_cat), lambda i: (0, 0)),    # Wcat (bf16)
                pl.BlockSpec((h2, h1), lambda i: (0, 0)),       # W1^T (bf16)
                pl.BlockSpec((h2, 1), lambda i: (0, 0)),        # b1 column (f32)
                pl.BlockSpec((h2, 1), lambda i: (0, 0)),        # W2 column (f32)
                pl.BlockSpec((1, 1), lambda i: (0, 0)),         # b2 (f32)
            ],
            out_specs=pl.BlockSpec((1, tile), lambda i: (0, i)),
        ),
        compiler_params=pltpu.CompilerParams(
            dimension_semantics=("parallel",)),
    )(x_cat, wcat, w1.T.astype(jnp.bfloat16),
      b1.reshape(h2, 1).astype(jnp.float32),
      w2.astype(jnp.float32),
      b2.reshape(1, 1).astype(jnp.float32))

    # squeeze(dim=-1) and drop node-padding columns
    return out[0, :num_nodes]


if __name__ == "__main__":
    key = jax.random.PRNGKey(0)
    kp, k1, k2, k3, k4, k5, k6, k7 = jax.random.split(key, 8)
    params = init_params(kp)

    # Case A: tiny problem (uses the small-n XLA fast path; exact semantics).
    idx_a = jnp.array([0] * 9 + [1] * 7, dtype=jnp.int32)
    n_a, att_a = idx_a.shape[0], 2
    x_a = jax.random.normal(k1, (n_a, NODE_HIDDEN_DIM), jnp.float32)
    c2_a = jax.random.normal(k2, (att_a, MOL_REPR_DIM), jnp.float32)
    tg_a = jax.random.normal(k3, (att_a, MOL_REPR_DIM), jnp.float32)
    out_a = jax.block_until_ready(
        select_attachment_atom_forward(params, x_a, idx_a, c2_a, tg_a))
    ref_a = reference(params, x_a, idx_a, c2_a, tg_a)
    assert out_a.shape == (n_a,)
    assert np.allclose(np.asarray(out_a), np.asarray(ref_a),
                       atol=2e-2, rtol=2e-2)

    # Case B: exercises the Pallas kernel (2048 nodes -> tile 1024, 2 parallel
    # grid steps, zero padding).
    n_b, att_b = 2048, 3
    idx_b = jax.random.randint(k4, (n_b,), 0, att_b, dtype=jnp.int32)
    x_b = jax.random.normal(k5, (n_b, NODE_HIDDEN_DIM), jnp.float32)
    c2_b = jax.random.normal(k6, (att_b, MOL_REPR_DIM), jnp.float32)
    tg_b = jax.random.normal(k7, (att_b, MOL_REPR_DIM), jnp.float32)
    out_b = jax.block_until_ready(
        select_attachment_atom_forward(params, x_b, idx_b, c2_b, tg_b))
    ref_b = reference(params, x_b, idx_b, c2_b, tg_b)
    assert out_b.shape == (n_b,)
    assert np.allclose(np.asarray(out_b), np.asarray(ref_b),
                       atol=2e-2, rtol=2e-2)

    print("KERNEL_OK")
</pallas_src>

<mosaic_0001>
module attributes {stable_mosaic.version = 11 : i64} {
  func.func @_mlp_kernel(%arg0: i32, %arg1: memref<48x1024xbf16, #tpu.memory_space<vmem>>, %arg2: memref<64x48xbf16, #tpu.memory_space<vmem>>, %arg3: memref<64x64xbf16, #tpu.memory_space<vmem>>, %arg4: memref<64x1xf32, #tpu.memory_space<vmem>>, %arg5: memref<64x1xf32, #tpu.memory_space<vmem>>, %arg6: memref<1x1xf32, #tpu.memory_space<vmem>>, %arg7: memref<1x1024xf32, #tpu.memory_space<vmem>>) attributes {dimension_semantics = [#tpu.dimension_semantics<parallel>], iteration_bounds = array<i64: 2>, scalar_prefetch = 0 : i64, scratch_operands = 0 : i64, tpu.core_type = #tpu.core_type<tc>, window_params = [{transform_indices = @transform_0, window_bounds = array<i64: 48, 1024>}, {pipeline_mode = #tpu.pipeline_mode<synchronous>, transform_indices = @transform_1, window_bounds = array<i64: 64, 48>}, {pipeline_mode = #tpu.pipeline_mode<synchronous>, transform_indices = @transform_2, window_bounds = array<i64: 64, 64>}, {pipeline_mode = #tpu.pipeline_mode<synchronous>, transform_indices = @transform_3, window_bounds = array<i64: 64, 1>}, {pipeline_mode = #tpu.pipeline_mode<synchronous>, transform_indices = @transform_4, window_bounds = array<i64: 64, 1>}, {pipeline_mode = #tpu.pipeline_mode<synchronous>, transform_indices = @transform_5, window_bounds = array<i64: 1, 1>}, {transform_indices = @transform_6, window_bounds = array<i64: 1, 1024>}]} {
    %c0 = arith.constant 0 : index
    %c0_0 = arith.constant 0 : index
    %0 = vector.load %arg2[%c0, %c0_0] : memref<64x48xbf16, #tpu.memory_space<vmem>>, vector<64x48xbf16>
    %c0_1 = arith.constant 0 : index
    %c0_2 = arith.constant 0 : index
    %1 = vector.load %arg1[%c0_1, %c0_2] : memref<48x1024xbf16, #tpu.memory_space<vmem>>, vector<48x1024xbf16>
    %cst = arith.constant dense<0.000000e+00> : vector<64x1024xf32>
    %2 = tpu.matmul %0, %1, %cst {dimension_numbers = #tpu.dot_dimension_numbers<[1], [0], [0], [1], [0, 0, 1, 1], [], []>} : vector<64x48xbf16>, vector<48x1024xbf16>, vector<64x1024xf32> -> vector<64x1024xf32>
    %cst_3 = arith.constant 0.000000e+00 : f32
    %3 = vector.broadcast %cst_3 : f32 to vector<64x1024xf32>
    %4 = arith.maximumf %2, %3 : vector<64x1024xf32>
    %c0_4 = arith.constant 0 : index
    %c0_5 = arith.constant 0 : index
    %5 = vector.load %arg3[%c0_4, %c0_5] : memref<64x64xbf16, #tpu.memory_space<vmem>>, vector<64x64xbf16>
    %6 = arith.truncf %4 : vector<64x1024xf32> to vector<64x1024xbf16>
    %cst_6 = arith.constant dense<0.000000e+00> : vector<64x1024xf32>
    %7 = tpu.matmul %5, %6, %cst_6 {dimension_numbers = #tpu.dot_dimension_numbers<[1], [0], [0], [1], [0, 0, 1, 1], [], []>} : vector<64x64xbf16>, vector<64x1024xbf16>, vector<64x1024xf32> -> vector<64x1024xf32>
    %c0_7 = arith.constant 0 : index
    %c0_8 = arith.constant 0 : index
    %8 = vector.load %arg4[%c0_7, %c0_8] : memref<64x1xf32, #tpu.memory_space<vmem>>, vector<64x1xf32>
    %9 = vector.broadcast %8 : vector<64x1xf32> to vector<64x1024xf32>
    %10 = arith.addf %7, %9 : vector<64x1024xf32>
    %cst_9 = arith.constant 0.000000e+00 : f32
    %11 = vector.broadcast %cst_9 : f32 to vector<64x1024xf32>
    %12 = arith.maximumf %10, %11 : vector<64x1024xf32>
    %c0_10 = arith.constant 0 : index
    %c0_11 = arith.constant 0 : index
    %13 = vector.load %arg5[%c0_10, %c0_11] : memref<64x1xf32, #tpu.memory_space<vmem>>, vector<64x1xf32>
    %14 = vector.broadcast %13 : vector<64x1xf32> to vector<64x1024xf32>
    %15 = arith.mulf %12, %14 : vector<64x1024xf32>
    %cst_12 = arith.constant dense<0.000000e+00> : vector<1024xf32>
    %16 = vector.multi_reduction <add>, %15, %cst_12 [0] : vector<64x1024xf32> to vector<1024xf32>
    %17 = vector.shape_cast %16 : vector<1024xf32> to vector<1x1024xf32>
    %c0_13 = arith.constant 0 : index
    %c0_14 = arith.constant 0 : index
    %18 = vector.load %arg6[%c0_13, %c0_14] : memref<1x1xf32, #tpu.memory_space<vmem>>, vector<1x1xf32>
    %19 = vector.broadcast %18 : vector<1x1xf32> to vector<1x1024xf32>
    %20 = arith.addf %17, %19 : vector<1x1024xf32>
    %21 = arith.negf %20 : vector<1x1024xf32>
    %22 = math.exp %21 : vector<1x1024xf32>
    %cst_15 = arith.constant 1.000000e+00 : f32
    %23 = vector.broadcast %cst_15 : f32 to vector<1x1024xf32>
    %24 = arith.addf %23, %22 : vector<1x1024xf32>
    %25 = arith.divf %23, %24 : vector<1x1024xf32>
    %c0_16 = arith.constant 0 : index
    %c0_17 = arith.constant 0 : index
    %26 = vector.load %arg7[%c0_16, %c0_17] : memref<1x1024xf32, #tpu.memory_space<vmem>>, vector<1x1024xf32>
    tpu.vector_store %arg7[%c0_16, %c0_17], %25 {strides = array<i32>} : memref<1x1024xf32, #tpu.memory_space<vmem>>, vector<1x1024xf32>,
    return
  }
  func.func @transform_0(%arg0: i32) -> (i32, i32) {
    %c0_i32 = arith.constant 0 : i32
    %c0_i32_0 = arith.constant 0 : i32
    return %c0_i32, %arg0 : i32, i32
  }
  func.func @transform_1(%arg0: i32) -> (i32, i32) {
    %c0_i32 = arith.constant 0 : i32
    %c0_i32_0 = arith.constant 0 : i32
    %c0_i32_1 = arith.constant 0 : i32
    return %c0_i32, %c0_i32_0 : i32, i32
  }
  func.func @transform_2(%arg0: i32) -> (i32, i32) {
    %c0_i32 = arith.constant 0 : i32
    %c0_i32_0 = arith.constant 0 : i32
    %c0_i32_1 = arith.constant 0 : i32
    return %c0_i32, %c0_i32_0 : i32, i32
  }
  func.func @transform_3(%arg0: i32) -> (i32, i32) {
    %c0_i32 = arith.constant 0 : i32
    %c0_i32_0 = arith.constant 0 : i32
    %c0_i32_1 = arith.constant 0 : i32
    return %c0_i32, %c0_i32_0 : i32, i32
  }
  func.func @transform_4(%arg0: i32) -> (i32, i32) {
    %c0_i32 = arith.constant 0 : i32
    %c0_i32_0 = arith.constant 0 : i32
    %c0_i32_1 = arith.constant 0 : i32
    return %c0_i32, %c0_i32_0 : i32, i32
  }
  func.func @transform_5(%arg0: i32) -> (i32, i32) {
    %c0_i32 = arith.constant 0 : i32
    %c0_i32_0 = arith.constant 0 : i32
    %c0_i32_1 = arith.constant 0 : i32
    return %c0_i32, %c0_i32_0 : i32, i32
  }
  func.func @transform_6(%arg0: i32) -> (i32, i32) {
    %c0_i32 = arith.constant 0 : i32
    %c0_i32_0 = arith.constant 0 : i32
    return %c0_i32, %arg0 : i32, i32
  }
}

</mosaic_0001>

<llo_original>
// kernel: tpu_custom_call.1
$region0: #{tpu_custom_call.1}
  #allocation0 [shape = 'u32[]', space=smem, size = 0x4, offset = 0x4, fixed_abs, tag = 'smem constant byte address 0x4 - core index']
  #allocation1 [shape = 'u32[72,128]{1,0:T(1,128)}', space=vmem, size = 0x9000, scoped, tag = 'internal scratch']
  #allocation2 [shape = 'f32[1,1]{1,0:T(1,128)S(1)}', space=vmem, size = 0x200, scoped, tag = 'scoped memory for tpu_custom_call.1']
  %s0 = inlined_call_operand.hbm [shape: bf16[48,2048], index: 0, kind: input, shape index: {}]
  %s1 = inlined_call_operand.vmem [shape: bf16[64,48], index: 1, kind: input, shape index: {}]
  %s2 = inlined_call_operand.vmem [shape: bf16[64,64], index: 2, kind: input, shape index: {}]
  %s3 = inlined_call_operand.vmem [shape: f32[64,1], index: 3, kind: input, shape index: {}]
  %s4 = inlined_call_operand.vmem [shape: f32[64,1], index: 4, kind: input, shape index: {}]
  %s5 = inlined_call_operand.<no memory space> [shape: f32[1,1], index: 5, kind: input, shape index: {}]
  %s6 = inlined_call_operand.hbm [shape: f32[1,2048], index: 6, kind: output, shape index: {}]
  %s7 = sld [smem:[#allocation0]]
  $region61: #{tpu_custom_call.1} parent=0
    _
  %s9 = ssub.s32 1, %s7
  %s10 = scalar_select 0, %s9, %s7
  %v11 = vstv %s5
  %12 = vst [vmem:[#allocation2] sm:$0x1] %v11
  $region1: #{tpu_custom_call.1} parent=0
    #allocation3 [shape = 'u8[196608]{0}', space=vmem, size = 0x30000, scoped, tag = 'input window, operand 0']
    #allocation4 [shape = 's32[2]{0}', space=sflag, size = 0x8, scoped, tag = 'scoped memory for tpu_custom_call.1']
    #allocation5 [shape = 's32[2]{0}', space=sflag, size = 0x8, scoped, tag = 'scoped memory for tpu_custom_call.1']
    #allocation6 [shape = 'u8[8192]{0}', space=vmem, size = 0x2000, scoped, tag = 'output window, operand 0']
    %13 = vsyncpa [#allocation4], 0
    %s14 = scalar_lea.sflag [#allocation4], 1
    %15 = vsyncpa %s14, 0
    %16 = vsyncpa [#allocation5], 0
    %s17 = scalar_lea.sflag [#allocation5], 1
    %18 = vsyncpa %s17, 0
    loop: start=0, step=1, limit=4
    $region2: #{tpu_custom_call.1} parent=1 // loop_pre_header
      _
    $region3: #{tpu_custom_call.1} parent=1 // loop_header
      %s20 = sphi 0, %s24
      %p21 = scmp.ge.s32.totalorder %s20, 4
      %s30 = sphi 0, %s32
      %s33 = sphi 0, %s30
      %s34 = sphi 0, %s33
      %s50 = sphi 0, %s34
      %s54 = sphi 0, %s54
      %s56 = sphi 0, %s54
      %s57 = sphi 0, %s56
      %s71 = sphi 0, %s57
      %s75 = sphi 0, %s75
      %s77 = sphi 0, %s75
      %s78 = sphi 0, %s77
      %s92 = sphi 0, %s78
      %s96 = sphi 0, %s96
      %s98 = sphi 0, %s96
      %s99 = sphi 0, %s98
      %s113 = sphi 0, %s99
      %s117 = sphi 0, %s117
      %s119 = sphi 0, %s117
      %s120 = sphi 0, %s119
      %s134 = sphi 0, %s120
      %s138 = sphi 0, %s138
      %s140 = sphi 0, %s138
      %s141 = sphi 0, %s140
      %s155 = sphi 0, %s141
      %s161 = sphi 0, %s163
      %s164 = sphi 0, %s161
      %s165 = sphi 0, %s164
      %s181 = sphi 0, %s165
    $region4: #{tpu_custom_call.1} parent=1 // loop_header_branch
      %23 = sbr.rel (%p21) target = $region8
    $region5: #{tpu_custom_call.1} parent=1 // loop_body
      %s25 = ssub.s32 %s20, 1
      %s26 = ssub.s32 %s20, 2
      %s27 = sadd.s32 %s20, 1
      %s28 = ssub.s32 %s20, %s27
      %p29 = scmp.eq.s32.totalorder %s28, 0
      %s31 = sadd.s32 %s30, 1
      %s32 = scalar_select %p29, %s30, %s31
      %p35 = pneg %p29
      %p36 = scmp.eq.s32.totalorder %s20, 1
      %p37 = por %p35, %p36
      %p38 = scmp.ne.s32.totalorder %s30, %s33
      %p39 = scmp.eq.s32.totalorder %s20, 0
      %p40 = por %p38, %p39
      %p41 = scmp.ne.s32.totalorder %s30, %s33
      %p42 = scmp.eq.s32.totalorder %s25, 1
      %p43 = por %p41, %p42
      %p44 = scmp.ne.s32.totalorder %s33, %s34
      %p45 = scmp.eq.s32.totalorder %s25, 0
      %p46 = por %p44, %p45
      %p47 = scmp.ne.s32.totalorder %s33, %s34
      %p48 = scmp.eq.s32.totalorder %s26, 1
      %p49 = por %p47, %p48
      %p51 = scmp.ne.s32.totalorder %s34, %s50
      %p52 = scmp.eq.s32.totalorder %s26, 0
      %p53 = por %p51, %p52
      %s55 = sadd.s32 %s54, 1
      %p58 = scmp.eq.s32.totalorder %s20, 1
      %p59 = scmp.ne.s32.totalorder %s54, %s56
      %p60 = scmp.eq.s32.totalorder %s20, 0
      %p61 = por %p59, %p60
      %p62 = scmp.ne.s32.totalorder %s54, %s56
      %p63 = scmp.eq.s32.totalorder %s25, 1
      %p64 = por %p62, %p63
      %p65 = scmp.ne.s32.totalorder %s56, %s57
      %p66 = scmp.eq.s32.totalorder %s25, 0
      %p67 = por %p65, %p66
      %p68 = scmp.ne.s32.totalorder %s56, %s57
      %p69 = scmp.eq.s32.totalorder %s26, 1
      %p70 = por %p68, %p69
      %p72 = scmp.ne.s32.totalorder %s57, %s71
      %p73 = scmp.eq.s32.totalorder %s26, 0
      %p74 = por %p72, %p73
      %s76 = sadd.s32 %s75, 1
      %p79 = scmp.eq.s32.totalorder %s20, 1
      %p80 = scmp.ne.s32.totalorder %s75, %s77
      %p81 = scmp.eq.s32.totalorder %s20, 0
      %p82 = por %p80, %p81
      %p83 = scmp.ne.s32.totalorder %s75, %s77
      %p84 = scmp.eq.s32.totalorder %s25, 1
      %p85 = por %p83, %p84
      %p86 = scmp.ne.s32.totalorder %s77, %s78
      %p87 = scmp.eq.s32.totalorder %s25, 0
      %p88 = por %p86, %p87
      %p89 = scmp.ne.s32.totalorder %s77, %s78
      %p90 = scmp.eq.s32.totalorder %s26, 1
      %p91 = por %p89, %p90
      %p93 = scmp.ne.s32.totalorder %s78, %s92
      %p94 = scmp.eq.s32.totalorder %s26, 0
      %p95 = por %p93, %p94
      %s97 = sadd.s32 %s96, 1
      %p100 = scmp.eq.s32.totalorder %s20, 1
      %p101 = scmp.ne.s32.totalorder %s96, %s98
      %p102 = scmp.eq.s32.totalorder %s20, 0
      %p103 = por %p101, %p102
      %p104 = scmp.ne.s32.totalorder %s96, %s98
      %p105 = scmp.eq.s32.totalorder %s25, 1
      %p106 = por %p104, %p105
      %p107 = scmp.ne.s32.totalorder %s98, %s99
      %p108 = scmp.eq.s32.totalorder %s25, 0
      %p109 = por %p107, %p108
      %p110 = scmp.ne.s32.totalorder %s98, %s99
      %p111 = scmp.eq.s32.totalorder %s26, 1
      %p112 = por %p110, %p111
      %p114 = scmp.ne.s32.totalorder %s99, %s113
      %p115 = scmp.eq.s32.totalorder %s26, 0
      %p116 = por %p114, %p115
      %s118 = sadd.s32 %s117, 1
      %p121 = scmp.eq.s32.totalorder %s20, 1
      %p122 = scmp.ne.s32.totalorder %s117, %s119
      %p123 = scmp.eq.s32.totalorder %s20, 0
      %p124 = por %p122, %p123
      %p125 = scmp.ne.s32.totalorder %s117, %s119
      %p126 = scmp.eq.s32.totalorder %s25, 1
      %p127 = por %p125, %p126
      %p128 = scmp.ne.s32.totalorder %s119, %s120
      %p129 = scmp.eq.s32.totalorder %s25, 0
      %p130 = por %p128, %p129
      %p131 = scmp.ne.s32.totalorder %s119, %s120
      %p132 = scmp.eq.s32.totalorder %s26, 1
      %p133 = por %p131, %p132
      %p135 = scmp.ne.s32.totalorder %s120, %s134
      %p136 = scmp.eq.s32.totalorder %s26, 0
      %p137 = por %p135, %p136
      %s139 = sadd.s32 %s138, 1
      %p142 = scmp.eq.s32.totalorder %s20, 1
      %p143 = scmp.ne.s32.totalorder %s138, %s140
      %p144 = scmp.eq.s32.totalorder %s20, 0
      %p145 = por %p143, %p144
      %p146 = scmp.ne.s32.totalorder %s138, %s140
      %p147 = scmp.eq.s32.totalorder %s25, 1
      %p148 = por %p146, %p147
      %p149 = scmp.ne.s32.totalorder %s140, %s141
      %p150 = scmp.eq.s32.totalorder %s25, 0
      %p151 = por %p149, %p150
      %p152 = scmp.ne.s32.totalorder %s140, %s141
      %p153 = scmp.eq.s32.totalorder %s26, 1
      %p154 = por %p152, %p153
      %p156 = scmp.ne.s32.totalorder %s141, %s155
      %p157 = scmp.eq.s32.totalorder %s26, 0
      %p158 = por %p156, %p157
      %s159 = ssub.s32 %s20, %s27
      %p160 = scmp.eq.s32.totalorder %s159, 0
      %s162 = sadd.s32 %s161, 1
      %s163 = scalar_select %p160, %s161, %s162
      %p166 = pneg %p160
      %p167 = scmp.eq.s32.totalorder %s20, 1
      %p168 = por %p166, %p167
      %p169 = scmp.ne.s32.totalorder %s161, %s164
      %p170 = scmp.eq.s32.totalorder %s20, 0
      %p171 = por %p169, %p170
      %p172 = scmp.ne.s32.totalorder %s161, %s164
      %p173 = scmp.eq.s32.totalorder %s25, 1
      %p174 = por %p172, %p173
      %p175 = scmp.ne.s32.totalorder %s164, %s165
      %p176 = scmp.eq.s32.totalorder %s25, 0
      %p177 = por %p175, %p176
      %p178 = scmp.ne.s32.totalorder %s164, %s165
      %p179 = scmp.eq.s32.totalorder %s26, 1
      %p180 = por %p178, %p179
      %p182 = scmp.ne.s32.totalorder %s165, %s181
      %p183 = scmp.eq.s32.totalorder %s26, 0
      %p184 = por %p182, %p183
      %p185 = scmp.le.s32.totalorder 1, %s20
      %p186 = scmp.lt.s32.totalorder %s20, 3
      %p187 = pnand %p185, %p186
      %p188 = pneg %p187
      // Predicated region
      $region9: #{tpu_custom_call.1} parent=5 // pred_check
        _
      $region10: #{tpu_custom_call.1} parent=5 // pred_check_branch
        %190 = sbr.rel (%p187) target = $region12
      $region11: #{tpu_custom_call.1} parent=5 // pred_region
        %s191 = ssub.s32 %s20, 1
        // Predicated region
        $region13: #{tpu_custom_call.1} parent=11 // pred_check
          %p192 = pneg %p67
        $region14: #{tpu_custom_call.1} parent=11 // pred_check_branch
          %194 = sbr.rel (%p192) target = $region16
        $region15: #{tpu_custom_call.1} parent=11 // pred_region
          _
        $region16: #{tpu_custom_call.1} parent=11 // pred_fallthru
          _
        // Predicated region
        $region17: #{tpu_custom_call.1} parent=11 // pred_check
          %p195 = pneg %p88
        $region18: #{tpu_custom_call.1} parent=11 // pred_check_branch
          %197 = sbr.rel (%p195) target = $region20
        $region19: #{tpu_custom_call.1} parent=11 // pred_region
          _
        $region20: #{tpu_custom_call.1} parent=11 // pred_fallthru
          _
        // Predicated region
        $region21: #{tpu_custom_call.1} parent=11 // pred_check
          %p198 = pneg %p109
        $region22: #{tpu_custom_call.1} parent=11 // pred_check_branch
          %200 = sbr.rel (%p198) target = $region24
        $region23: #{tpu_custom_call.1} parent=11 // pred_region
          _
        $region24: #{tpu_custom_call.1} parent=11 // pred_fallthru
          _
        // Predicated region
        $region25: #{tpu_custom_call.1} parent=11 // pred_check
          %p201 = pneg %p130
        $region26: #{tpu_custom_call.1} parent=11 // pred_check_branch
          %203 = sbr.rel (%p201) target = $region28
        $region27: #{tpu_custom_call.1} parent=11 // pred_region
          _
        $region28: #{tpu_custom_call.1} parent=11 // pred_fallthru
          _
        // Predicated region
        $region29: #{tpu_custom_call.1} parent=11 // pred_check
          %p204 = pneg %p151
        $region30: #{tpu_custom_call.1} parent=11 // pred_check_branch
          %206 = sbr.rel (%p204) target = $region32
        $region31: #{tpu_custom_call.1} parent=11 // pred_region
          _
        $region32: #{tpu_custom_call.1} parent=11 // pred_fallthru
          _
      $region12: #{tpu_custom_call.1} parent=5 // pred_fallthru
        _
      %p207 = scmp.lt.s32.totalorder %s20, 2
      // Predicated region
      $region33: #{tpu_custom_call.1} parent=5 // pred_check
        %p208 = pneg %p207
      $region34: #{tpu_custom_call.1} parent=5 // pred_check_branch
        %210 = sbr.rel (%p208) target = $region36
      $region35: #{tpu_custom_call.1} parent=5 // pred_region
        // Predicated region
        $region37: #{tpu_custom_call.1} parent=35 // pred_check
          %p211 = pneg %p40
        $region38: #{tpu_custom_call.1} parent=35 // pred_check_branch
          %213 = sbr.rel (%p211) target = $region40
        $region39: #{tpu_custom_call.1} parent=35 // pred_region
          %s214 = sand.u32 %s30, 1
          %s215 = scalar_lea.sflag [#allocation4], %s214
          %s216 = sand.u32 %s30, 1
          %s217 = smul.addr %s216, 192
          %s218 = scalar_lea.vmem [#allocation3], %s217
          %s219 = smul.u32 8, %s20
          %221 = vsyncadd %s215, 0
          %s222 = smul.addr %s219, 4
          %s223 = scalar_lea.hbm %s0, %s222
          %s224 = sshll.u32 %s223, 4
          %s225 = int_to_ptr.hbm [resolvable:$true] %s224
          %s226 = sshll.u32 %s218, 4
          %s227 = int_to_ptr.vmem [resolvable:$true] %s226
          %232 = dma.hbm_to_vmem [thread:$0]  %s225, 3072, %s227, %s215, 1024, 512, 32
        $region40: #{tpu_custom_call.1} parent=35 // pred_fallthru
          _
      $region36: #{tpu_custom_call.1} parent=5 // pred_fallthru
        _
      %p233 = scmp.le.s32.totalorder 1, %s20
      %p234 = scmp.lt.s32.totalorder %s20, 3
      %p235 = pnand %p233, %p234
      %p236 = pneg %p235
      // Predicated region
      $region41: #{tpu_custom_call.1} parent=5 // pred_check
        _
      $region42: #{tpu_custom_call.1} parent=5 // pred_check_branch
        %238 = sbr.rel (%p235) target = $region44
      $region43: #{tpu_custom_call.1} parent=5 // pred_region
        %s239 = ssub.s32 %s20, 1
        %s240 = sand.u32 %s33, 1
        %s241 = scalar_lea.sflag [#allocation4], %s240
        %s242 = sand.u32 %s33, 1
        %s243 = smul.addr %s242, 192
        %s244 = scalar_lea.vmem [#allocation3], %s243
        // Predicated region
        $region45: #{tpu_custom_call.1} parent=43 // pred_check
          %p245 = pneg %p46
        $region46: #{tpu_custom_call.1} parent=43 // pred_check_branch
          %247 = sbr.rel (%p245) target = $region48
        $region47: #{tpu_custom_call.1} parent=43 // pred_region
          %249 = dma.done %s241, 3072
        $region48: #{tpu_custom_call.1} parent=43 // pred_fallthru
          _
        %s250 = sand.u32 %s33, 1
        %s251 = scalar_lea.sflag [#allocation4], %s250
        %s252 = sand.u32 %s33, 1
        %s253 = smul.addr %s252, 192
        %s254 = scalar_lea.vmem [#allocation3], %s253
        %p255 = pneg %p46
        %p256 = pneg %p43
        %p257 = pneg %p67
        %p258 = pneg %p64
        %p259 = pneg %p88
        %p260 = pneg %p85
        %p261 = pneg %p109
        %p262 = pneg %p106
        %p263 = pneg %p130
        %p264 = pneg %p127
        %p265 = pneg %p151
        %p266 = pneg %p148
        %p267 = pneg %p177
        %p268 = pneg %p174
        %s269 = sand.u32 %s164, 1
        %s270 = scalar_lea.sflag [#allocation5], %s269
        %s271 = sand.u32 %s164, 1
        %s272 = smul.addr %s271, 8
        %s273 = scalar_lea.vmem [#allocation6], %s272
        %s274 = smul.u32 8, %s25
        %s275 = smul.u32 8, %s25
        %v277 = vld [vmem:[%s1] sm:$0xf]
        %v278 = vld [vmem:[%s1 + $0x4] sm:$0xf]
        %v279 = vld [vmem:[%s1 + $0x8] sm:$0xf]
        %v280 = vld [vmem:[%s1 + $0xc] sm:$0xf]
        %v281 = vld [vmem:[%s1 + $0x10] sm:$0xf]
        %v282 = vld [vmem:[%s1 + $0x14] sm:$0xf]
        %v283 = vld [vmem:[%s1 + $0x18] sm:$0xf]
        %v284 = vld [vmem:[%s1 + $0x1c] sm:$0xf]
        %v285 = vld [vmem:[%s244] sm:$0xff]
        %v286 = vld [vmem:[%s244 + $0x8] sm:$0xff]
        %v287 = vld [vmem:[%s244 + $0x10] sm:$0xff]
        %v288 = vld [vmem:[%s244 + $0x18] sm:$0xff]
        %v289 = vld [vmem:[%s244 + $0x20] sm:$0xff]
        %v290 = vld [vmem:[%s244 + $0x28] sm:$0xff]
        %v291 = vld [vmem:[%s244 + $0x30] sm:$0xff]
        %v292 = vld [vmem:[%s244 + $0x38] sm:$0xff]
        %v293 = vld [vmem:[%s244 + $0x40] sm:$0xff]
        %v294 = vld [vmem:[%s244 + $0x48] sm:$0xff]
        %v295 = vld [vmem:[%s244 + $0x50] sm:$0xff]
        %v296 = vld [vmem:[%s244 + $0x58] sm:$0xff]
        %v297 = vld [vmem:[%s244 + $0x60] sm:$0xff]
        %v298 = vld [vmem:[%s244 + $0x68] sm:$0xff]
        %v299 = vld [vmem:[%s244 + $0x70] sm:$0xff]
        %v300 = vld [vmem:[%s244 + $0x78] sm:$0xff]
        %v301 = vld [vmem:[%s244 + $0x80] sm:$0xff]
        %v302 = vld [vmem:[%s244 + $0x88] sm:$0xff]
        %v303 = vld [vmem:[%s244 + $0x90] sm:$0xff]
        %v304 = vld [vmem:[%s244 + $0x98] sm:$0xff]
        %v305 = vld [vmem:[%s244 + $0xa0] sm:$0xff]
        %v306 = vld [vmem:[%s244 + $0xa8] sm:$0xff]
        %v307 = vld [vmem:[%s244 + $0xb0] sm:$0xff]
        %v308 = vld [vmem:[%s244 + $0xb8] sm:$0xff]
        %v317 = vunpack.c.l.b16 %v277
        %v318 = vunpack.c.l.b16 %v278
        %v319 = vunpack.c.l.b16 %v279
        %v320 = vunpack.c.l.b16 %v280
        %v321 = vunpack.c.l.b16 %v281
        %v322 = vunpack.c.l.b16 %v282
        %v323 = vunpack.c.l.b16 %v283
        %v324 = vunpack.c.l.b16 %v284
        %v325 = vpack.c.b16 %v318, %v317
        %v326 = vpack.c.b16 %v320, %v319
        %v327 = vpack.c.b16 %v322, %v321
        %v328 = vpack.c.b16 %v324, %v323
        %v353 = vunpack.c.l.b16 %v285
        %v354 = vunpack.c.h.b16 %v285
        %v355 = vunpack.c.l.b16 %v286
        %v356 = vunpack.c.h.b16 %v286
        %v357 = vunpack.c.l.b16 %v287
        %v358 = vunpack.c.h.b16 %v287
        %v359 = vunpack.c.l.b16 %v288
        %v360 = vunpack.c.h.b16 %v288
        %v361 = vunpack.c.l.b16 %v289
        %v362 = vunpack.c.h.b16 %v289
        %v363 = vunpack.c.l.b16 %v290
        %v364 = vunpack.c.h.b16 %v290
        %v365 = vunpack.c.l.b16 %v291
        %v366 = vunpack.c.h.b16 %v291
        %v367 = vunpack.c.l.b16 %v292
        %v368 = vunpack.c.h.b16 %v292
        %v369 = vunpack.c.l.b16 %v293
        %v370 = vunpack.c.h.b16 %v293
        %v371 = vunpack.c.l.b16 %v294
        %v372 = vunpack.c.h.b16 %v294
        %v373 = vunpack.c.l.b16 %v295
        %v374 = vunpack.c.h.b16 %v295
        %v375 = vunpack.c.l.b16 %v296
        %v376 = vunpack.c.h.b16 %v296
        %v377 = vunpack.c.l.b16 %v297
        %v378 = vunpack.c.h.b16 %v297
        %v379 = vunpack.c.l.b16 %v298
        %v380 = vunpack.c.h.b16 %v298
        %v381 = vunpack.c.l.b16 %v299
        %v382 = vunpack.c.h.b16 %v299
        %v383 = vunpack.c.l.b16 %v300
        %v384 = vunpack.c.h.b16 %v300
        %v385 = vunpack.c.l.b16 %v301
        %v386 = vunpack.c.h.b16 %v301
        %v387 = vunpack.c.l.b16 %v302
        %v388 = vunpack.c.h.b16 %v302
        %v389 = vunpack.c.l.b16 %v303
        %v390 = vunpack.c.h.b16 %v303
        %v391 = vunpack.c.l.b16 %v304
        %v392 = vunpack.c.h.b16 %v304
        %v393 = vunpack.c.l.b16 %v305
        %v394 = vunpack.c.h.b16 %v305
        %v395 = vunpack.c.l.b16 %v306
        %v396 = vunpack.c.h.b16 %v306
        %v397 = vunpack.c.l.b16 %v307
        %v398 = vunpack.c.h.b16 %v307
        %v399 = vunpack.c.l.b16 %v308
        %v400 = vunpack.c.h.b16 %v308
        %v401 = vpack.c.b16 %v361, %v353
        %v402 = vpack.c.b16 %v362, %v354
        %v403 = vpack.c.b16 %v363, %v355
        %v404 = vpack.c.b16 %v364, %v356
        %v405 = vpack.c.b16 %v365, %v357
        %v406 = vpack.c.b16 %v366, %v358
        %v407 = vpack.c.b16 %v367, %v359
        %v408 = vpack.c.b16 %v368, %v360
        %v409 = vpack.c.b16 %v377, %v369
        %v410 = vpack.c.b16 %v378, %v370
        %v411 = vpack.c.b16 %v379, %v371
        %v412 = vpack.c.b16 %v380, %v372
        %v413 = vpack.c.b16 %v381, %v373
        %v414 = vpack.c.b16 %v382, %v374
        %v415 = vpack.c.b16 %v383, %v375
        %v416 = vpack.c.b16 %v384, %v376
        %v417 = vpack.c.b16 %v393, %v385
        %v418 = vpack.c.b16 %v394, %v386
        %v419 = vpack.c.b16 %v395, %v387
        %v420 = vpack.c.b16 %v396, %v388
        %v421 = vpack.c.b16 %v397, %v389
        %v422 = vpack.c.b16 %v398, %v390
        %v423 = vpack.c.b16 %v399, %v391
        %v424 = vpack.c.b16 %v400, %v392
        %vm449 = vcmask 392192
        %v451 = vsel %vm449, %v325, 0
        %v454 = vsel %vm449, %v326, 0
        %v457 = vsel %vm449, %v327, 0
        %v460 = vsel %vm449, %v328, 0
        %462 = vmatpush.bf16.msra.mxu0 0
        %463 = vmatpush.bf16.msra.mxu0 0
        %464 = vmatpush.bf16.msra.mxu0 0
        %465 = vmatpush.bf16.msra.mxu0 0
        %466 = vmatpush.bf16.msra.mxu0 0
        %467 = vmatpush.bf16.msra.mxu0 %v417
        %468 = vmatpush.bf16.msra.mxu0 %v409
        %469 = vmatpush.bf16.msra.mxu0 %v401
        %470 = vmatmul.bf16.gmra.mxu0 %v451
        %v471 = vpop.f32.mrf.mxu0
        %v472 = vadd.f32 0.0, %v471
        %v473 = vpop.f32.mrf.mxu0
        %v474 = vadd.f32 0.0, %v473
        %475 = vmatmul.bf16.gmra.mxu0 %v454
        %v476 = vpop.f32.mrf.mxu0
        %v477 = vadd.f32 0.0, %v476
        %v478 = vpop.f32.mrf.mxu0
        %v479 = vadd.f32 0.0, %v478
        %480 = vmatmul.bf16.gmra.mxu0 %v457
        %v481 = vpop.f32.mrf.mxu0
        %v482 = vadd.f32 0.0, %v481
        %v483 = vpop.f32.mrf.mxu0
        %v484 = vadd.f32 0.0, %v483
        %485 = vmatmul.bf16.gmra.mxu0 %v460
        %v486 = vpop.f32.mrf.mxu0
        %v487 = vadd.f32 0.0, %v486
        %v488 = vpop.f32.mrf.mxu0
        %v489 = vadd.f32 0.0, %v488
        %490 = vdwg.mxu0
        %491 = vmatpush.bf16.msra.mxu0 0
        %492 = vmatpush.bf16.msra.mxu0 0
        %493 = vmatpush.bf16.msra.mxu0 0
        %494 = vmatpush.bf16.msra.mxu0 0
        %495 = vmatpush.bf16.msra.mxu0 0
        %496 = vmatpush.bf16.msra.mxu0 %v418
        %497 = vmatpush.bf16.msra.mxu0 %v410
        %498 = vmatpush.bf16.msra.mxu0 %v402
        %499 = vmatmul.bf16.gmra.mxu0 %v451
        %v500 = vpop.f32.mrf.mxu0
        %v501 = vadd.f32 0.0, %v500
        %v502 = vpop.f32.mrf.mxu0
        %v503 = vadd.f32 0.0, %v502
        %504 = vmatmul.bf16.gmra.mxu0 %v454
        %v505 = vpop.f32.mrf.mxu0
        %v506 = vadd.f32 0.0, %v505
        %v507 = vpop.f32.mrf.mxu0
        %v508 = vadd.f32 0.0, %v507
        %509 = vmatmul.bf16.gmra.mxu0 %v457
        %v510 = vpop.f32.mrf.mxu0
        %v511 = vadd.f32 0.0, %v510
        %v512 = vpop.f32.mrf.mxu0
        %v513 = vadd.f32 0.0, %v512
        %514 = vmatmul.bf16.gmra.mxu0 %v460
        %v515 = vpop.f32.mrf.mxu0
        %v516 = vadd.f32 0.0, %v515
        %v517 = vpop.f32.mrf.mxu0
        %v518 = vadd.f32 0.0, %v517
        %519 = vdwg.mxu0
        %520 = vmatpush.bf16.msra.mxu0 0
        %521 = vmatpush.bf16.msra.mxu0 0
        %522 = vmatpush.bf16.msra.mxu0 0
        %523 = vmatpush.bf16.msra.mxu0 0
        %524 = vmatpush.bf16.msra.mxu0 0
        %525 = vmatpush.bf16.msra.mxu0 %v419
        %526 = vmatpush.bf16.msra.mxu0 %v411
        %527 = vmatpush.bf16.msra.mxu0 %v403
        %528 = vmatmul.bf16.gmra.mxu0 %v451
        %v529 = vpop.f32.mrf.mxu0
        %v530 = vadd.f32 0.0, %v529
        %v531 = vpop.f32.mrf.mxu0
        %v532 = vadd.f32 0.0, %v531
        %533 = vmatmul.bf16.gmra.mxu0 %v454
        %v534 = vpop.f32.mrf.mxu0
        %v535 = vadd.f32 0.0, %v534
        %v536 = vpop.f32.mrf.mxu0
        %v537 = vadd.f32 0.0, %v536
        %538 = vmatmul.bf16.gmra.mxu0 %v457
        %v539 = vpop.f32.mrf.mxu0
        %v540 = vadd.f32 0.0, %v539
        %v541 = vpop.f32.mrf.mxu0
        %v542 = vadd.f32 0.0, %v541
        %543 = vmatmul.bf16.gmra.mxu0 %v460
        %v544 = vpop.f32.mrf.mxu0
        %v545 = vadd.f32 0.0, %v544
        %v546 = vpop.f32.mrf.mxu0
        %v547 = vadd.f32 0.0, %v546
        %548 = vdwg.mxu0
        %549 = vmatpush.bf16.msra.mxu0 0
        %550 = vmatpush.bf16.msra.mxu0 0
        %551 = vmatpush.bf16.msra.mxu0 0
        %552 = vmatpush.bf16.msra.mxu0 0
        %553 = vmatpush.bf16.msra.mxu0 0
        %554 = vmatpush.bf16.msra.mxu0 %v420
        %555 = vmatpush.bf16.msra.mxu0 %v412
        %556 = vmatpush.bf16.msra.mxu0 %v404
        %557 = vmatmul.bf16.gmra.mxu0 %v451
        %v558 = vpop.f32.mrf.mxu0
        %v559 = vadd.f32 0.0, %v558
        %v560 = vpop.f32.mrf.mxu0
        %v561 = vadd.f32 0.0, %v560
        %562 = vmatmul.bf16.gmra.mxu0 %v454
        %v563 = vpop.f32.mrf.mxu0
        %v564 = vadd.f32 0.0, %v563
        %v565 = vpop.f32.mrf.mxu0
        %v566 = vadd.f32 0.0, %v565
        %567 = vmatmul.bf16.gmra.mxu0 %v457
        %v568 = vpop.f32.mrf.mxu0
        %v569 = vadd.f32 0.0, %v568
        %v570 = vpop.f32.mrf.mxu0
        %v571 = vadd.f32 0.0, %v570
        %572 = vmatmul.bf16.gmra.mxu0 %v460
        %v573 = vpop.f32.mrf.mxu0
        %v574 = vadd.f32 0.0, %v573
        %v575 = vpop.f32.mrf.mxu0
        %v576 = vadd.f32 0.0, %v575
        %577 = vdwg.mxu0
        %578 = vmatpush.bf16.msra.mxu0 0
        %579 = vmatpush.bf16.msra.mxu0 0
        %580 = vmatpush.bf16.msra.mxu0 0
        %581 = vmatpush.bf16.msra.mxu0 0
        %582 = vmatpush.bf16.msra.mxu0 0
        %583 = vmatpush.bf16.msra.mxu0 %v421
        %584 = vmatpush.bf16.msra.mxu0 %v413
        %585 = vmatpush.bf16.msra.mxu0 %v405
        %586 = vmatmul.bf16.gmra.mxu0 %v451
        %v587 = vpop.f32.mrf.mxu0
        %v588 = vadd.f32 0.0, %v587
        %v589 = vpop.f32.mrf.mxu0
        %v590 = vadd.f32 0.0, %v589
        %591 = vmatmul.bf16.gmra.mxu0 %v454
        %v592 = vpop.f32.mrf.mxu0
        %v593 = vadd.f32 0.0, %v592
        %v594 = vpop.f32.mrf.mxu0
        %v595 = vadd.f32 0.0, %v594
        %596 = vmatmul.bf16.gmra.mxu0 %v457
        %v597 = vpop.f32.mrf.mxu0
        %v598 = vadd.f32 0.0, %v597
        %v599 = vpop.f32.mrf.mxu0
        %v600 = vadd.f32 0.0, %v599
        %601 = vmatmul.bf16.gmra.mxu0 %v460
        %v602 = vpop.f32.mrf.mxu0
        %v603 = vadd.f32 0.0, %v602
        %v604 = vpop.f32.mrf.mxu0
        %v605 = vadd.f32 0.0, %v604
        %606 = vdwg.mxu0
        %607 = vmatpush.bf16.msra.mxu0 0
        %608 = vmatpush.bf16.msra.mxu0 0
        %609 = vmatpush.bf16.msra.mxu0 0
        %610 = vmatpush.bf16.msra.mxu0 0
        %611 = vmatpush.bf16.msra.mxu0 0
        %612 = vmatpush.bf16.msra.mxu0 %v422
        %613 = vmatpush.bf16.msra.mxu0 %v414
        %614 = vmatpush.bf16.msra.mxu0 %v406
        %615 = vmatmul.bf16.gmra.mxu0 %v451
        %v616 = vpop.f32.mrf.mxu0
        %v617 = vadd.f32 0.0, %v616
        %v618 = vpop.f32.mrf.mxu0
        %v619 = vadd.f32 0.0, %v618
        %620 = vmatmul.bf16.gmra.mxu0 %v454
        %v621 = vpop.f32.mrf.mxu0
        %v622 = vadd.f32 0.0, %v621
        %v623 = vpop.f32.mrf.mxu0
        %v624 = vadd.f32 0.0, %v623
        %625 = vmatmul.bf16.gmra.mxu0 %v457
        %v626 = vpop.f32.mrf.mxu0
        %v627 = vadd.f32 0.0, %v626
        %v628 = vpop.f32.mrf.mxu0
        %v629 = vadd.f32 0.0, %v628
        %630 = vmatmul.bf16.gmra.mxu0 %v460
        %v631 = vpop.f32.mrf.mxu0
        %v632 = vadd.f32 0.0, %v631
        %v633 = vpop.f32.mrf.mxu0
        %v634 = vadd.f32 0.0, %v633
        %635 = vdwg.mxu0
        %636 = vmatpush.bf16.msra.mxu0 0
        %637 = vmatpush.bf16.msra.mxu0 0
        %638 = vmatpush.bf16.msra.mxu0 0
        %639 = vmatpush.bf16.msra.mxu0 0
        %640 = vmatpush.bf16.msra.mxu0 0
        %641 = vmatpush.bf16.msra.mxu0 %v423
        %642 = vmatpush.bf16.msra.mxu0 %v415
        %643 = vmatpush.bf16.msra.mxu0 %v407
        %644 = vmatmul.bf16.gmra.mxu0 %v451
        %v645 = vpop.f32.mrf.mxu0
        %v646 = vadd.f32 0.0, %v645
        %v647 = vpop.f32.mrf.mxu0
        %v648 = vadd.f32 0.0, %v647
        %649 = vmatmul.bf16.gmra.mxu0 %v454
        %v650 = vpop.f32.mrf.mxu0
        %v651 = vadd.f32 0.0, %v650
        %v652 = vpop.f32.mrf.mxu0
        %v653 = vadd.f32 0.0, %v652
        %654 = vmatmul.bf16.gmra.mxu0 %v457
        %v655 = vpop.f32.mrf.mxu0
        %v656 = vadd.f32 0.0, %v655
        %v657 = vpop.f32.mrf.mxu0
        %v658 = vadd.f32 0.0, %v657
        %659 = vmatmul.bf16.gmra.mxu0 %v460
        %v660 = vpop.f32.mrf.mxu0
        %v661 = vadd.f32 0.0, %v660
        %v662 = vpop.f32.mrf.mxu0
        %v663 = vadd.f32 0.0, %v662
        %664 = vdwg.mxu0
        %665 = vmatpush.bf16.msra.mxu0 0
        %666 = vmatpush.bf16.msra.mxu0 0
        %667 = vmatpush.bf16.msra.mxu0 0
        %668 = vmatpush.bf16.msra.mxu0 0
        %669 = vmatpush.bf16.msra.mxu0 0
        %670 = vmatpush.bf16.msra.mxu0 %v424
        %671 = vmatpush.bf16.msra.mxu0 %v416
        %672 = vmatpush.bf16.msra.mxu0 %v408
        %673 = vmatmul.bf16.gmra.mxu0 %v451
        %v674 = vpop.f32.mrf.mxu0
        %v675 = vadd.f32 0.0, %v674
        %v676 = vpop.f32.mrf.mxu0
        %v677 = vadd.f32 0.0, %v676
        %678 = vmatmul.bf16.gmra.mxu0 %v454
        %v679 = vpop.f32.mrf.mxu0
        %v680 = vadd.f32 0.0, %v679
        %v681 = vpop.f32.mrf.mxu0
        %v682 = vadd.f32 0.0, %v681
        %683 = vmatmul.bf16.gmra.mxu0 %v457
        %v684 = vpop.f32.mrf.mxu0
        %v685 = vadd.f32 0.0, %v684
        %v686 = vpop.f32.mrf.mxu0
        %v687 = vadd.f32 0.0, %v686
        %688 = vmatmul.bf16.gmra.mxu0 %v460
        %v689 = vpop.f32.mrf.mxu0
        %v690 = vadd.f32 0.0, %v689
        %v691 = vpop.f32.mrf.mxu0
        %v692 = vadd.f32 0.0, %v691
        %693 = vdwg.mxu0
        %v694 = vmax.f32 %v472, 0.0
        %v695 = vmax.f32 %v501, 0.0
        %v696 = vmax.f32 %v530, 0.0
        %v697 = vmax.f32 %v559, 0.0
        %v698 = vmax.f32 %v588, 0.0
        %v699 = vmax.f32 %v617, 0.0
        %v700 = vmax.f32 %v646, 0.0
        %v701 = vmax.f32 %v675, 0.0
        %v702 = vmax.f32 %v474, 0.0
        %v703 = vmax.f32 %v503, 0.0
        %v704 = vmax.f32 %v532, 0.0
        %v705 = vmax.f32 %v561, 0.0
        %v706 = vmax.f32 %v590, 0.0
        %v707 = vmax.f32 %v619, 0.0
        %v708 = vmax.f32 %v648, 0.0
        %v709 = vmax.f32 %v677, 0.0
        %v710 = vmax.f32 %v477, 0.0
        %v711 = vmax.f32 %v506, 0.0
        %v712 = vmax.f32 %v535, 0.0
        %v713 = vmax.f32 %v564, 0.0
        %v714 = vmax.f32 %v593, 0.0
        %v715 = vmax.f32 %v622, 0.0
        %v716 = vmax.f32 %v651, 0.0
        %v717 = vmax.f32 %v680, 0.0
        %v718 = vmax.f32 %v479, 0.0
        %v719 = vmax.f32 %v508, 0.0
        %v720 = vmax.f32 %v537, 0.0
        %v721 = vmax.f32 %v566, 0.0
        %v722 = vmax.f32 %v595, 0.0
        %v723 = vmax.f32 %v624, 0.0
        %v724 = vmax.f32 %v653, 0.0
        %v725 = vmax.f32 %v682, 0.0
        %v726 = vmax.f32 %v482, 0.0
        %v727 = vmax.f32 %v511, 0.0
        %v728 = vmax.f32 %v540, 0.0
        %v729 = vmax.f32 %v569, 0.0
        %v730 = vmax.f32 %v598, 0.0
        %v731 = vmax.f32 %v627, 0.0
        %v732 = vmax.f32 %v656, 0.0
        %v733 = vmax.f32 %v685, 0.0
        %v734 = vmax.f32 %v484, 0.0
        %v735 = vmax.f32 %v513, 0.0
        %v736 = vmax.f32 %v542, 0.0
        %v737 = vmax.f32 %v571, 0.0
        %v738 = vmax.f32 %v600, 0.0
        %v739 = vmax.f32 %v629, 0.0
        %v740 = vmax.f32 %v658, 0.0
        %v741 = vmax.f32 %v687, 0.0
        %v742 = vmax.f32 %v487, 0.0
        %v743 = vmax.f32 %v516, 0.0
        %v744 = vmax.f32 %v545, 0.0
        %v745 = vmax.f32 %v574, 0.0
        %v746 = vmax.f32 %v603, 0.0
        %v747 = vmax.f32 %v632, 0.0
        %v748 = vmax.f32 %v661, 0.0
        %v749 = vmax.f32 %v690, 0.0
        %v750 = vmax.f32 %v489, 0.0
        %v751 = vmax.f32 %v518, 0.0
        %v752 = vmax.f32 %v547, 0.0
        %v753 = vmax.f32 %v576, 0.0
        %v754 = vmax.f32 %v605, 0.0
        %v755 = vmax.f32 %v634, 0.0
        %v756 = vmax.f32 %v663, 0.0
        %v757 = vmax.f32 %v692, 0.0
        %v758 = vld [vmem:[%s2] sm:$0xf]
        %v759 = vld [vmem:[%s2 + $0x4] sm:$0xf]
        %v760 = vld [vmem:[%s2 + $0x8] sm:$0xf]
        %v761 = vld [vmem:[%s2 + $0xc] sm:$0xf]
        %v762 = vld [vmem:[%s2 + $0x10] sm:$0xf]
        %v763 = vld [vmem:[%s2 + $0x14] sm:$0xf]
        %v764 = vld [vmem:[%s2 + $0x18] sm:$0xf]
        %v765 = vld [vmem:[%s2 + $0x1c] sm:$0xf]
        %v766 = vpack.c.bf16 %v702, %v694
        %v767 = vpack.c.bf16 %v703, %v695
        %v768 = vpack.c.bf16 %v704, %v696
        %v769 = vpack.c.bf16 %v705, %v697
        %v770 = vpack.c.bf16 %v706, %v698
        %v771 = vpack.c.bf16 %v707, %v699
        %v772 = vpack.c.bf16 %v708, %v700
        %v773 = vpack.c.bf16 %v709, %v701
        %v774 = vpack.c.bf16 %v718, %v710
        %v775 = vpack.c.bf16 %v719, %v711
        %v776 = vpack.c.bf16 %v720, %v712
        %v777 = vpack.c.bf16 %v721, %v713
        %v778 = vpack.c.bf16 %v722, %v714
        %v779 = vpack.c.bf16 %v723, %v715
        %v780 = vpack.c.bf16 %v724, %v716
        %v781 = vpack.c.bf16 %v725, %v717
        %v782 = vpack.c.bf16 %v734, %v726
        %v783 = vpack.c.bf16 %v735, %v727
        %v784 = vpack.c.bf16 %v736, %v728
        %v785 = vpack.c.bf16 %v737, %v729
        %v786 = vpack.c.bf16 %v738, %v730
        %v787 = vpack.c.bf16 %v739, %v731
        %v788 = vpack.c.bf16 %v740, %v732
        %v789 = vpack.c.bf16 %v741, %v733
        %v790 = vpack.c.bf16 %v750, %v742
        %v791 = vpack.c.bf16 %v751, %v743
        %v792 = vpack.c.bf16 %v752, %v744
        %v793 = vpack.c.bf16 %v753, %v745
        %v794 = vpack.c.bf16 %v754, %v746
        %v795 = vpack.c.bf16 %v755, %v747
        %v796 = vpack.c.bf16 %v756, %v748
        %v797 = vpack.c.bf16 %v757, %v749
        %v798 = vld [vmem:[%s3] sm:$0xff]
        %v799 = vld [vmem:[%s3 + $0x8] sm:$0xff]
        %v800 = vld [vmem:[%s3 + $0x10] sm:$0xff]
        %v801 = vld [vmem:[%s3 + $0x18] sm:$0xff]
        %v802 = vld [vmem:[%s3 + $0x20] sm:$0xff]
        %v803 = vld [vmem:[%s3 + $0x28] sm:$0xff]
        %v804 = vld [vmem:[%s3 + $0x30] sm:$0xff]
        %v805 = vld [vmem:[%s3 + $0x38] sm:$0xff]
        %807 = vset.pattern.permute.xlu0 0
        %808 = vperm.xlu0 %807, %v798
        %v809 = vpop.permute.xlu0 %808
        %812 = vset.pattern.permute.xlu0 0
        %813 = vperm.xlu0 %812, %v799
        %v814 = vpop.permute.xlu0 %813
        %817 = vset.pattern.permute.xlu0 0
        %818 = vperm.xlu0 %817, %v800
        %v819 = vpop.permute.xlu0 %818
        %822 = vset.pattern.permute.xlu0 0
        %823 = vperm.xlu0 %822, %v801
        %v824 = vpop.permute.xlu0 %823
        %827 = vset.pattern.permute.xlu0 0
        %828 = vperm.xlu0 %827, %v802
        %v829 = vpop.permute.xlu0 %828
        %832 = vset.pattern.permute.xlu0 0
        %833 = vperm.xlu0 %832, %v803
        %v834 = vpop.permute.xlu0 %833
        %837 = vset.pattern.permute.xlu0 0
        %838 = vperm.xlu0 %837, %v804
        %v839 = vpop.permute.xlu0 %838
        %842 = vset.pattern.permute.xlu0 0
        %843 = vperm.xlu0 %842, %v805
        %v844 = vpop.permute.xlu0 %843
        %v854 = vunpack.c.l.b16 %v758
        %v855 = vunpack.c.l.b16 %v759
        %v856 = vunpack.c.l.b16 %v760
        %v857 = vunpack.c.l.b16 %v761
        %v858 = vunpack.c.l.b16 %v762
        %v859 = vunpack.c.l.b16 %v763
        %v860 = vunpack.c.l.b16 %v764
        %v861 = vunpack.c.l.b16 %v765
        %v862 = vpack.c.b16 %v855, %v854
        %v863 = vpack.c.b16 %v857, %v856
        %v864 = vpack.c.b16 %v859, %v858
        %v865 = vpack.c.b16 %v861, %v860
        %vm866 = vcmask 523264
        %v868 = vsel %vm866, %v862, 0
        %v871 = vsel %vm866, %v863, 0
        %v874 = vsel %vm866, %v864, 0
        %v877 = vsel %vm866, %v865, 0
        %879 = vmatpush.bf16.msra.mxu0 0
        %880 = vmatpush.bf16.msra.mxu0 0
        %881 = vmatpush.bf16.msra.mxu0 0
        %882 = vmatpush.bf16.msra.mxu0 0
        %883 = vmatpush.bf16.msra.mxu0 %v790
        %884 = vmatpush.bf16.msra.mxu0 %v782
        %885 = vmatpush.bf16.msra.mxu0 %v774
        %886 = vmatpush.bf16.msra.mxu0 %v766
        %887 = vmatmul.bf16.gmra.mxu0 %v868
        %v888 = vpop.f32.mrf.mxu0
        %v889 = vadd.f32 %v809, %v888
        %v890 = vpop.f32.mrf.mxu0
        %v891 = vadd.f32 %v814, %v890
        %892 = vmatmul.bf16.gmra.mxu0 %v871
        %v893 = vpop.f32.mrf.mxu0
        %v894 = vadd.f32 %v819, %v893
        %v895 = vpop.f32.mrf.mxu0
        %v896 = vadd.f32 %v824, %v895
        %897 = vmatmul.bf16.gmra.mxu0 %v874
        %v898 = vpop.f32.mrf.mxu0
        %v899 = vadd.f32 %v829, %v898
        %v900 = vpop.f32.mrf.mxu0
        %v901 = vadd.f32 %v834, %v900
        %902 = vmatmul.bf16.gmra.mxu0 %v877
        %v903 = vpop.f32.mrf.mxu0
        %v904 = vadd.f32 %v839, %v903
        %v905 = vpop.f32.mrf.mxu0
        %v906 = vadd.f32 %v844, %v905
        %907 = vdwg.mxu0
        %908 = vmatpush.bf16.msra.mxu0 0
        %909 = vmatpush.bf16.msra.mxu0 0
        %910 = vmatpush.bf16.msra.mxu0 0
        %911 = vmatpush.bf16.msra.mxu0 0
        %912 = vmatpush.bf16.msra.mxu0 %v791
        %913 = vmatpush.bf16.msra.mxu0 %v783
        %914 = vmatpush.bf16.msra.mxu0 %v775
        %915 = vmatpush.bf16.msra.mxu0 %v767
        %916 = vmatmul.bf16.gmra.mxu0 %v868
        %v917 = vpop.f32.mrf.mxu0
        %v918 = vadd.f32 %v809, %v917
        %v919 = vpop.f32.mrf.mxu0
        %v920 = vadd.f32 %v814, %v919
        %921 = vmatmul.bf16.gmra.mxu0 %v871
        %v922 = vpop.f32.mrf.mxu0
        %v923 = vadd.f32 %v819, %v922
        %v924 = vpop.f32.mrf.mxu0
        %v925 = vadd.f32 %v824, %v924
        %926 = vmatmul.bf16.gmra.mxu0 %v874
        %v927 = vpop.f32.mrf.mxu0
        %v928 = vadd.f32 %v829, %v927
        %v929 = vpop.f32.mrf.mxu0
        %v930 = vadd.f32 %v834, %v929
        %931 = vmatmul.bf16.gmra.mxu0 %v877
        %v932 = vpop.f32.mrf.mxu0
        %v933 = vadd.f32 %v839, %v932
        %v934 = vpop.f32.mrf.mxu0
        %v935 = vadd.f32 %v844, %v934
        %936 = vdwg.mxu0
        %937 = vmatpush.bf16.msra.mxu0 0
        %938 = vmatpush.bf16.msra.mxu0 0
        %939 = vmatpush.bf16.msra.mxu0 0
        %940 = vmatpush.bf16.msra.mxu0 0
        %941 = vmatpush.bf16.msra.mxu0 %v792
        %942 = vmatpush.bf16.msra.mxu0 %v784
        %943 = vmatpush.bf16.msra.mxu0 %v776
        %944 = vmatpush.bf16.msra.mxu0 %v768
        %945 = vmatmul.bf16.gmra.mxu0 %v868
        %v946 = vpop.f32.mrf.mxu0
        %v947 = vadd.f32 %v809, %v946
        %v948 = vpop.f32.mrf.mxu0
        %v949 = vadd.f32 %v814, %v948
        %950 = vmatmul.bf16.gmra.mxu0 %v871
        %v951 = vpop.f32.mrf.mxu0
        %v952 = vadd.f32 %v819, %v951
        %v953 = vpop.f32.mrf.mxu0
        %v954 = vadd.f32 %v824, %v953
        %955 = vmatmul.bf16.gmra.mxu0 %v874
        %v956 = vpop.f32.mrf.mxu0
        %v957 = vadd.f32 %v829, %v956
        %v958 = vpop.f32.mrf.mxu0
        %v959 = vadd.f32 %v834, %v958
        %960 = vmatmul.bf16.gmra.mxu0 %v877
        %v961 = vpop.f32.mrf.mxu0
        %v962 = vadd.f32 %v839, %v961
        %v963 = vpop.f32.mrf.mxu0
        %v964 = vadd.f32 %v844, %v963
        %965 = vdwg.mxu0
        %966 = vmatpush.bf16.msra.mxu0 0
        %967 = vmatpush.bf16.msra.mxu0 0
        %968 = vmatpush.bf16.msra.mxu0 0
        %969 = vmatpush.bf16.msra.mxu0 0
        %970 = vmatpush.bf16.msra.mxu0 %v793
        %971 = vmatpush.bf16.msra.mxu0 %v785
        %972 = vmatpush.bf16.msra.mxu0 %v777
        %973 = vmatpush.bf16.msra.mxu0 %v769
        %974 = vmatmul.bf16.gmra.mxu0 %v868
        %v975 = vpop.f32.mrf.mxu0
        %v976 = vadd.f32 %v809, %v975
        %v977 = vpop.f32.mrf.mxu0
        %v978 = vadd.f32 %v814, %v977
        %979 = vmatmul.bf16.gmra.mxu0 %v871
        %v980 = vpop.f32.mrf.mxu0
        %v981 = vadd.f32 %v819, %v980
        %v982 = vpop.f32.mrf.mxu0
        %v983 = vadd.f32 %v824, %v982
        %984 = vmatmul.bf16.gmra.mxu0 %v874
        %v985 = vpop.f32.mrf.mxu0
        %v986 = vadd.f32 %v829, %v985
        %v987 = vpop.f32.mrf.mxu0
        %v988 = vadd.f32 %v834, %v987
        %989 = vmatmul.bf16.gmra.mxu0 %v877
        %v990 = vpop.f32.mrf.mxu0
        %v991 = vadd.f32 %v839, %v990
        %v992 = vpop.f32.mrf.mxu0
        %v993 = vadd.f32 %v844, %v992
        %994 = vdwg.mxu0
        %995 = vmatpush.bf16.msra.mxu0 0
        %996 = vmatpush.bf16.msra.mxu0 0
        %997 = vmatpush.bf16.msra.mxu0 0
        %998 = vmatpush.bf16.msra.mxu0 0
        %999 = vmatpush.bf16.msra.mxu0 %v794
        %1000 = vmatpush.bf16.msra.mxu0 %v786
        %1001 = vmatpush.bf16.msra.mxu0 %v778
        %1002 = vmatpush.bf16.msra.mxu0 %v770
        %1003 = vmatmul.bf16.gmra.mxu0 %v868
        %v1004 = vpop.f32.mrf.mxu0
        %v1005 = vadd.f32 %v809, %v1004
        %v1006 = vpop.f32.mrf.mxu0
        %v1007 = vadd.f32 %v814, %v1006
        %1008 = vmatmul.bf16.gmra.mxu0 %v871
        %v1009 = vpop.f32.mrf.mxu0
        %v1010 = vadd.f32 %v819, %v1009
        %v1011 = vpop.f32.mrf.mxu0
        %v1012 = vadd.f32 %v824, %v1011
        %1013 = vmatmul.bf16.gmra.mxu0 %v874
        %v1014 = vpop.f32.mrf.mxu0
        %v1015 = vadd.f32 %v829, %v1014
        %v1016 = vpop.f32.mrf.mxu0
        %v1017 = vadd.f32 %v834, %v1016
        %1018 = vmatmul.bf16.gmra.mxu0 %v877
        %v1019 = vpop.f32.mrf.mxu0
        %v1020 = vadd.f32 %v839, %v1019
        %v1021 = vpop.f32.mrf.mxu0
        %v1022 = vadd.f32 %v844, %v1021
        %1023 = vdwg.mxu0
        %1024 = vmatpush.bf16.msra.mxu0 0
        %1025 = vmatpush.bf16.msra.mxu0 0
        %1026 = vmatpush.bf16.msra.mxu0 0
        %1027 = vmatpush.bf16.msra.mxu0 0
        %1028 = vmatpush.bf16.msra.mxu0 %v795
        %1029 = vmatpush.bf16.msra.mxu0 %v787
        %1030 = vmatpush.bf16.msra.mxu0 %v779
        %1031 = vmatpush.bf16.msra.mxu0 %v771
        %1032 = vmatmul.bf16.gmra.mxu0 %v868
        %v1033 = vpop.f32.mrf.mxu0
        %v1034 = vadd.f32 %v809, %v1033
        %v1035 = vpop.f32.mrf.mxu0
        %v1036 = vadd.f32 %v814, %v1035
        %1037 = vmatmul.bf16.gmra.mxu0 %v871
        %v1038 = vpop.f32.mrf.mxu0
        %v1039 = vadd.f32 %v819, %v1038
        %v1040 = vpop.f32.mrf.mxu0
        %v1041 = vadd.f32 %v824, %v1040
        %1042 = vmatmul.bf16.gmra.mxu0 %v874
        %v1043 = vpop.f32.mrf.mxu0
        %v1044 = vadd.f32 %v829, %v1043
        %v1045 = vpop.f32.mrf.mxu0
        %v1046 = vadd.f32 %v834, %v1045
        %1047 = vmatmul.bf16.gmra.mxu0 %v877
        %v1048 = vpop.f32.mrf.mxu0
        %v1049 = vadd.f32 %v839, %v1048
        %v1050 = vpop.f32.mrf.mxu0
        %v1051 = vadd.f32 %v844, %v1050
        %1052 = vdwg.mxu0
        %1053 = vmatpush.bf16.msra.mxu0 0
        %1054 = vmatpush.bf16.msra.mxu0 0
        %1055 = vmatpush.bf16.msra.mxu0 0
        %1056 = vmatpush.bf16.msra.mxu0 0
        %1057 = vmatpush.bf16.msra.mxu0 %v796
        %1058 = vmatpush.bf16.msra.mxu0 %v788
        %1059 = vmatpush.bf16.msra.mxu0 %v780
        %1060 = vmatpush.bf16.msra.mxu0 %v772
        %1061 = vmatmul.bf16.gmra.mxu0 %v868
        %v1062 = vpop.f32.mrf.mxu0
        %v1063 = vadd.f32 %v809, %v1062
        %v1064 = vpop.f32.mrf.mxu0
        %v1065 = vadd.f32 %v814, %v1064
        %1066 = vmatmul.bf16.gmra.mxu0 %v871
        %v1067 = vpop.f32.mrf.mxu0
        %v1068 = vadd.f32 %v819, %v1067
        %v1069 = vpop.f32.mrf.mxu0
        %v1070 = vadd.f32 %v824, %v1069
        %1071 = vmatmul.bf16.gmra.mxu0 %v874
        %v1072 = vpop.f32.mrf.mxu0
        %v1073 = vadd.f32 %v829, %v1072
        %v1074 = vpop.f32.mrf.mxu0
        %v1075 = vadd.f32 %v834, %v1074
        %1076 = vmatmul.bf16.gmra.mxu0 %v877
        %v1077 = vpop.f32.mrf.mxu0
        %v1078 = vadd.f32 %v839, %v1077
        %v1079 = vpop.f32.mrf.mxu0
        %v1080 = vadd.f32 %v844, %v1079
        %1081 = vdwg.mxu0
        %1082 = vmatpush.bf16.msra.mxu0 0
        %1083 = vmatpush.bf16.msra.mxu0 0
        %1084 = vmatpush.bf16.msra.mxu0 0
        %1085 = vmatpush.bf16.msra.mxu0 0
        %1086 = vmatpush.bf16.msra.mxu0 %v797
        %1087 = vmatpush.bf16.msra.mxu0 %v789
        %1088 = vmatpush.bf16.msra.mxu0 %v781
        %1089 = vmatpush.bf16.msra.mxu0 %v773
        %1090 = vmatmul.bf16.gmra.mxu0 %v868
        %v1091 = vpop.f32.mrf.mxu0
        %v1092 = vadd.f32 %v809, %v1091
        %v1093 = vpop.f32.mrf.mxu0
        %v1094 = vadd.f32 %v814, %v1093
        %1095 = vmatmul.bf16.gmra.mxu0 %v871
        %v1096 = vpop.f32.mrf.mxu0
        %v1097 = vadd.f32 %v819, %v1096
        %v1098 = vpop.f32.mrf.mxu0
        %v1099 = vadd.f32 %v824, %v1098
        %1100 = vmatmul.bf16.gmra.mxu0 %v874
        %v1101 = vpop.f32.mrf.mxu0
        %v1102 = vadd.f32 %v829, %v1101
        %v1103 = vpop.f32.mrf.mxu0
        %v1104 = vadd.f32 %v834, %v1103
        %1105 = vmatmul.bf16.gmra.mxu0 %v877
        %v1106 = vpop.f32.mrf.mxu0
        %v1107 = vadd.f32 %v839, %v1106
        %v1108 = vpop.f32.mrf.mxu0
        %v1109 = vadd.f32 %v844, %v1108
        %1110 = vdwg.mxu0
        %v1111 = vmax.f32 %v889, 0.0
        %v1112 = vmax.f32 %v918, 0.0
        %v1113 = vmax.f32 %v947, 0.0
        %v1114 = vmax.f32 %v976, 0.0
        %v1115 = vmax.f32 %v1005, 0.0
        %v1116 = vmax.f32 %v1034, 0.0
        %v1117 = vmax.f32 %v1063, 0.0
        %v1118 = vmax.f32 %v1092, 0.0
        %v1119 = vmax.f32 %v891, 0.0
        %v1120 = vmax.f32 %v920, 0.0
        %v1121 = vmax.f32 %v949, 0.0
        %v1122 = vmax.f32 %v978, 0.0
        %v1123 = vmax.f32 %v1007, 0.0
        %v1124 = vmax.f32 %v1036, 0.0
        %v1125 = vmax.f32 %v1065, 0.0
        %v1126 = vmax.f32 %v1094, 0.0
        %v1127 = vmax.f32 %v894, 0.0
        %v1128 = vmax.f32 %v923, 0.0
        %v1129 = vmax.f32 %v952, 0.0
        %v1130 = vmax.f32 %v981, 0.0
        %v1131 = vmax.f32 %v1010, 0.0
        %v1132 = vmax.f32 %v1039, 0.0
        %v1133 = vmax.f32 %v1068, 0.0
        %v1134 = vmax.f32 %v1097, 0.0
        %v1135 = vmax.f32 %v896, 0.0
        %v1136 = vmax.f32 %v925, 0.0
        %v1137 = vmax.f32 %v954, 0.0
        %v1138 = vmax.f32 %v983, 0.0
        %v1139 = vmax.f32 %v1012, 0.0
        %v1140 = vmax.f32 %v1041, 0.0
        %v1141 = vmax.f32 %v1070, 0.0
        %v1142 = vmax.f32 %v1099, 0.0
        %v1143 = vmax.f32 %v899, 0.0
        %v1144 = vmax.f32 %v928, 0.0
        %v1145 = vmax.f32 %v957, 0.0
        %v1146 = vmax.f32 %v986, 0.0
        %v1147 = vmax.f32 %v1015, 0.0
        %v1148 = vmax.f32 %v1044, 0.0
        %v1149 = vmax.f32 %v1073, 0.0
        %v1150 = vmax.f32 %v1102, 0.0
        %v1151 = vmax.f32 %v901, 0.0
        %v1152 = vmax.f32 %v930, 0.0
        %v1153 = vmax.f32 %v959, 0.0
        %v1154 = vmax.f32 %v988, 0.0
        %v1155 = vmax.f32 %v1017, 0.0
        %v1156 = vmax.f32 %v1046, 0.0
        %v1157 = vmax.f32 %v1075, 0.0
        %v1158 = vmax.f32 %v1104, 0.0
        %v1159 = vmax.f32 %v904, 0.0
        %v1160 = vmax.f32 %v933, 0.0
        %v1161 = vmax.f32 %v962, 0.0
        %v1162 = vmax.f32 %v991, 0.0
        %v1163 = vmax.f32 %v1020, 0.0
        %v1164 = vmax.f32 %v1049, 0.0
        %v1165 = vmax.f32 %v1078, 0.0
        %v1166 = vmax.f32 %v1107, 0.0
        %v1167 = vmax.f32 %v906, 0.0
        %v1168 = vmax.f32 %v935, 0.0
        %v1169 = vmax.f32 %v964, 0.0
        %v1170 = vmax.f32 %v993, 0.0
        %v1171 = vmax.f32 %v1022, 0.0
        %v1172 = vmax.f32 %v1051, 0.0
        %v1173 = vmax.f32 %v1080, 0.0
        %v1174 = vmax.f32 %v1109, 0.0
        %v1175 = vld [vmem:[%s4] sm:$0xff]
        %v1176 = vld [vmem:[%s4 + $0x8] sm:$0xff]
        %v1177 = vld [vmem:[%s4 + $0x10] sm:$0xff]
        %v1178 = vld [vmem:[%s4 + $0x18] sm:$0xff]
        %v1179 = vld [vmem:[%s4 + $0x20] sm:$0xff]
        %v1180 = vld [vmem:[%s4 + $0x28] sm:$0xff]
        %v1181 = vld [vmem:[%s4 + $0x30] sm:$0xff]
        %v1182 = vld [vmem:[%s4 + $0x38] sm:$0xff]
        %1184 = vset.pattern.permute.xlu0 0
        %1185 = vperm.xlu0 %1184, %v1175
        %v1186 = vpop.permute.xlu0 %1185
        %1189 = vset.pattern.permute.xlu0 0
        %1190 = vperm.xlu0 %1189, %v1176
        %v1191 = vpop.permute.xlu0 %1190
        %1194 = vset.pattern.permute.xlu0 0
        %1195 = vperm.xlu0 %1194, %v1177
        %v1196 = vpop.permute.xlu0 %1195
        %1199 = vset.pattern.permute.xlu0 0
        %1200 = vperm.xlu0 %1199, %v1178
        %v1201 = vpop.permute.xlu0 %1200
        %1204 = vset.pattern.permute.xlu0 0
        %1205 = vperm.xlu0 %1204, %v1179
        %v1206 = vpop.permute.xlu0 %1205
        %1209 = vset.pattern.permute.xlu0 0
        %1210 = vperm.xlu0 %1209, %v1180
        %v1211 = vpop.permute.xlu0 %1210
        %1214 = vset.pattern.permute.xlu0 0
        %1215 = vperm.xlu0 %1214, %v1181
        %v1216 = vpop.permute.xlu0 %1215
        %1219 = vset.pattern.permute.xlu0 0
        %1220 = vperm.xlu0 %1219, %v1182
        %v1221 = vpop.permute.xlu0 %1220
        %v1223 = vmul.f32 %v1111, %v1186
        %v1224 = vmul.f32 %v1112, %v1186
        %v1225 = vmul.f32 %v1113, %v1186
        %v1226 = vmul.f32 %v1114, %v1186
        %v1227 = vmul.f32 %v1115, %v1186
        %v1228 = vmul.f32 %v1116, %v1186
        %v1229 = vmul.f32 %v1117, %v1186
        %v1230 = vmul.f32 %v1118, %v1186
        %v1231 = vmul.f32 %v1119, %v1191
        %v1232 = vmul.f32 %v1120, %v1191
        %v1233 = vmul.f32 %v1121, %v1191
        %v1234 = vmul.f32 %v1122, %v1191
        %v1235 = vmul.f32 %v1123, %v1191
        %v1236 = vmul.f32 %v1124, %v1191
        %v1237 = vmul.f32 %v1125, %v1191
        %v1238 = vmul.f32 %v1126, %v1191
        %v1239 = vmul.f32 %v1127, %v1196
        %v1240 = vmul.f32 %v1128, %v1196
        %v1241 = vmul.f32 %v1129, %v1196
        %v1242 = vmul.f32 %v1130, %v1196
        %v1243 = vmul.f32 %v1131, %v1196
        %v1244 = vmul.f32 %v1132, %v1196
        %v1245 = vmul.f32 %v1133, %v1196
        %v1246 = vmul.f32 %v1134, %v1196
        %v1247 = vmul.f32 %v1135, %v1201
        %v1248 = vmul.f32 %v1136, %v1201
        %v1249 = vmul.f32 %v1137, %v1201
        %v1250 = vmul.f32 %v1138, %v1201
        %v1251 = vmul.f32 %v1139, %v1201
        %v1252 = vmul.f32 %v1140, %v1201
        %v1253 = vmul.f32 %v1141, %v1201
        %v1254 = vmul.f32 %v1142, %v1201
        %v1255 = vmul.f32 %v1143, %v1206
        %v1256 = vmul.f32 %v1144, %v1206
        %v1257 = vmul.f32 %v1145, %v1206
        %v1258 = vmul.f32 %v1146, %v1206
        %v1259 = vmul.f32 %v1147, %v1206
        %v1260 = vmul.f32 %v1148, %v1206
        %v1261 = vmul.f32 %v1149, %v1206
        %v1262 = vmul.f32 %v1150, %v1206
        %v1263 = vmul.f32 %v1151, %v1211
        %v1264 = vmul.f32 %v1152, %v1211
        %v1265 = vmul.f32 %v1153, %v1211
        %v1266 = vmul.f32 %v1154, %v1211
        %v1267 = vmul.f32 %v1155, %v1211
        %v1268 = vmul.f32 %v1156, %v1211
        %v1269 = vmul.f32 %v1157, %v1211
        %v1270 = vmul.f32 %v1158, %v1211
        %v1271 = vmul.f32 %v1159, %v1216
        %v1272 = vmul.f32 %v1160, %v1216
        %v1273 = vmul.f32 %v1161, %v1216
        %v1274 = vmul.f32 %v1162, %v1216
        %v1275 = vmul.f32 %v1163, %v1216
        %v1276 = vmul.f32 %v1164, %v1216
        %v1277 = vmul.f32 %v1165, %v1216
        %v1278 = vmul.f32 %v1166, %v1216
        %v1279 = vmul.f32 %v1167, %v1221
        %v1280 = vmul.f32 %v1168, %v1221
        %v1281 = vmul.f32 %v1169, %v1221
        %v1282 = vmul.f32 %v1170, %v1221
        %v1283 = vmul.f32 %v1171, %v1221
        %v1284 = vmul.f32 %v1172, %v1221
        %v1285 = vmul.f32 %v1173, %v1221
        %v1286 = vmul.f32 %v1174, %v1221
        %v1287 = vadd.f32 %v1223, %v1231
        %v1288 = vadd.f32 %v1287, %v1239
        %v1289 = vadd.f32 %v1288, %v1247
        %v1290 = vadd.f32 %v1289, %v1255
        %v1291 = vadd.f32 %v1290, %v1263
        %v1292 = vadd.f32 %v1291, %v1271
        %v1293 = vadd.f32 %v1292, %v1279
        %v1294 = vrot.slane %v1293, 4
        %v1295 = vadd.f32 %v1293, %v1294
        %v1296 = vrot.slane %v1295, 2
        %v1297 = vadd.f32 %v1295, %v1296
        %v1298 = vrot.slane %v1297, 1
        %v1299 = vadd.f32 %v1297, %v1298
        %v1300 = vadd.f32 %v1224, %v1232
        %v1301 = vadd.f32 %v1300, %v1240
        %v1302 = vadd.f32 %v1301, %v1248
        %v1303 = vadd.f32 %v1302, %v1256
        %v1304 = vadd.f32 %v1303, %v1264
        %v1305 = vadd.f32 %v1304, %v1272
        %v1306 = vadd.f32 %v1305, %v1280
        %v1307 = vrot.slane %v1306, 4
        %v1308 = vadd.f32 %v1306, %v1307
        %v1309 = vrot.slane %v1308, 2
        %v1310 = vadd.f32 %v1308, %v1309
        %v1311 = vrot.slane %v1310, 1
        %v1312 = vadd.f32 %v1310, %v1311
        %v1313 = vadd.f32 %v1225, %v1233
        %v1314 = vadd.f32 %v1313, %v1241
        %v1315 = vadd.f32 %v1314, %v1249
        %v1316 = vadd.f32 %v1315, %v1257
        %v1317 = vadd.f32 %v1316, %v1265
        %v1318 = vadd.f32 %v1317, %v1273
        %v1319 = vadd.f32 %v1318, %v1281
        %v1320 = vrot.slane %v1319, 4
        %v1321 = vadd.f32 %v1319, %v1320
        %v1322 = vrot.slane %v1321, 2
        %v1323 = vadd.f32 %v1321, %v1322
        %v1324 = vrot.slane %v1323, 1
        %v1325 = vadd.f32 %v1323, %v1324
        %v1326 = vadd.f32 %v1226, %v1234
        %v1327 = vadd.f32 %v1326, %v1242
        %v1328 = vadd.f32 %v1327, %v1250
        %v1329 = vadd.f32 %v1328, %v1258
        %v1330 = vadd.f32 %v1329, %v1266
        %v1331 = vadd.f32 %v1330, %v1274
        %v1332 = vadd.f32 %v1331, %v1282
        %v1333 = vrot.slane %v1332, 4
        %v1334 = vadd.f32 %v1332, %v1333
        %v1335 = vrot.slane %v1334, 2
        %v1336 = vadd.f32 %v1334, %v1335
        %v1337 = vrot.slane %v1336, 1
        %v1338 = vadd.f32 %v1336, %v1337
        %v1339 = vadd.f32 %v1227, %v1235
        %v1340 = vadd.f32 %v1339, %v1243
        %v1341 = vadd.f32 %v1340, %v1251
        %v1342 = vadd.f32 %v1341, %v1259
        %v1343 = vadd.f32 %v1342, %v1267
        %v1344 = vadd.f32 %v1343, %v1275
        %v1345 = vadd.f32 %v1344, %v1283
        %v1346 = vrot.slane %v1345, 4
        %v1347 = vadd.f32 %v1345, %v1346
        %v1348 = vrot.slane %v1347, 2
        %v1349 = vadd.f32 %v1347, %v1348
        %v1350 = vrot.slane %v1349, 1
        %v1351 = vadd.f32 %v1349, %v1350
        %v1352 = vadd.f32 %v1228, %v1236
        %v1353 = vadd.f32 %v1352, %v1244
        %v1354 = vadd.f32 %v1353, %v1252
        %v1355 = vadd.f32 %v1354, %v1260
        %v1356 = vadd.f32 %v1355, %v1268
        %v1357 = vadd.f32 %v1356, %v1276
        %v1358 = vadd.f32 %v1357, %v1284
        %v1359 = vrot.slane %v1358, 4
        %v1360 = vadd.f32 %v1358, %v1359
        %v1361 = vrot.slane %v1360, 2
        %v1362 = vadd.f32 %v1360, %v1361
        %v1363 = vrot.slane %v1362, 1
        %v1364 = vadd.f32 %v1362, %v1363
        %v1365 = vadd.f32 %v1229, %v1237
        %v1366 = vadd.f32 %v1365, %v1245
        %v1367 = vadd.f32 %v1366, %v1253
        %v1368 = vadd.f32 %v1367, %v1261
        %v1369 = vadd.f32 %v1368, %v1269
        %v1370 = vadd.f32 %v1369, %v1277
        %v1371 = vadd.f32 %v1370, %v1285
        %v1372 = vrot.slane %v1371, 4
        %v1373 = vadd.f32 %v1371, %v1372
        %v1374 = vrot.slane %v1373, 2
        %v1375 = vadd.f32 %v1373, %v1374
        %v1376 = vrot.slane %v1375, 1
        %v1377 = vadd.f32 %v1375, %v1376
        %v1378 = vadd.f32 %v1230, %v1238
        %v1379 = vadd.f32 %v1378, %v1246
        %v1380 = vadd.f32 %v1379, %v1254
        %v1381 = vadd.f32 %v1380, %v1262
        %v1382 = vadd.f32 %v1381, %v1270
        %v1383 = vadd.f32 %v1382, %v1278
        %v1384 = vadd.f32 %v1383, %v1286
        %v1385 = vrot.slane %v1384, 4
        %v1386 = vadd.f32 %v1384, %v1385
        %v1387 = vrot.slane %v1386, 2
        %v1388 = vadd.f32 %v1386, %v1387
        %v1389 = vrot.slane %v1388, 1
        %v1390 = vadd.f32 %v1388, %v1389
        %v1391 = vld [vmem:[#allocation2] sm:$0x1]
        %1393 = vset.pattern.permute.xlu0 0
        %1394 = vperm.xlu0 %1393, %v1391
        %v1395 = vpop.permute.xlu0 %1394
        %v1397 = vperm.slane %v1395, 0
        %v1398 = vadd.f32 %v1299, %v1397
        %v1399 = vadd.f32 %v1312, %v1397
        %v1400 = vadd.f32 %v1325, %v1397
        %v1401 = vadd.f32 %v1338, %v1397
        %v1402 = vadd.f32 %v1351, %v1397
        %v1403 = vadd.f32 %v1364, %v1397
        %v1404 = vadd.f32 %v1377, %v1397
        %v1405 = vadd.f32 %v1390, %v1397
        %v1406 = vxor.u32 %v1398, 2147483648
        %v1407 = vxor.u32 %v1399, 2147483648
        %v1408 = vxor.u32 %v1400, 2147483648
        %v1409 = vxor.u32 %v1401, 2147483648
        %v1410 = vxor.u32 %v1402, 2147483648
        %v1411 = vxor.u32 %v1403, 2147483648
        %v1412 = vxor.u32 %v1404, 2147483648
        %v1413 = vxor.u32 %v1405, 2147483648
        %v1414 = vmul.f32 %v1406, 1.442695
        %v1415 = vpow.pop %v1414
        %v1416 = vmul.f32 %v1407, 1.442695
        %v1417 = vpow.pop %v1416
        %v1418 = vmul.f32 %v1408, 1.442695
        %v1419 = vpow.pop %v1418
        %v1420 = vmul.f32 %v1409, 1.442695
        %v1421 = vpow.pop %v1420
        %v1422 = vmul.f32 %v1410, 1.442695
        %v1423 = vpow.pop %v1422
        %v1424 = vmul.f32 %v1411, 1.442695
        %v1425 = vpow.pop %v1424
        %v1426 = vmul.f32 %v1412, 1.442695
        %v1427 = vpow.pop %v1426
        %v1428 = vmul.f32 %v1413, 1.442695
        %v1429 = vpow.pop %v1428
        %v1430 = vadd.f32 %v1415, 1.0
        %v1431 = vadd.f32 %v1417, 1.0
        %v1432 = vadd.f32 %v1419, 1.0
        %v1433 = vadd.f32 %v1421, 1.0
        %v1434 = vadd.f32 %v1423, 1.0
        %v1435 = vadd.f32 %v1425, 1.0
        %v1436 = vadd.f32 %v1427, 1.0
        %v1437 = vadd.f32 %v1429, 1.0
        %v1438 = vrcp.pop %v1430
        %v1439 = vmul.f32 %v1430, %v1438
        %v1440 = vsub.f32 1.0, %v1439
        %v1441 = vmul.f32 %v1438, %v1440
        %v1442 = vadd.f32 %v1438, %v1441
        %vm1443 = vweird.f32 %v1430
        %vm1444 = vweird.f32 %v1438
        %vm1445 = vmor %vm1443, %vm1444
        %v1446 = vsel %vm1445, %v1438, %v1442
        %v1447 = vand.u32 2147483647, %v1430
        %vm1448 = vcmp.eq.f32.partialorder %v1447, 8.507059e+37
        %v1449 = vand.u32 %v1430, 2147483648
        %v1450 = vor.u32 1.1754944e-38, %v1449
        %v1451 = vsel %vm1448, %v1450, %v1446
        %v1452 = vmul.f32 1.0, %v1451
        %v1453 = vrcp.pop %v1431
        %v1454 = vmul.f32 %v1431, %v1453
        %v1455 = vsub.f32 1.0, %v1454
        %v1456 = vmul.f32 %v1453, %v1455
        %v1457 = vadd.f32 %v1453, %v1456
        %vm1458 = vweird.f32 %v1431
        %vm1459 = vweird.f32 %v1453
        %vm1460 = vmor %vm1458, %vm1459
        %v1461 = vsel %vm1460, %v1453, %v1457
        %v1462 = vand.u32 2147483647, %v1431
        %vm1463 = vcmp.eq.f32.partialorder %v1462, 8.507059e+37
        %v1464 = vand.u32 %v1431, 2147483648
        %v1465 = vor.u32 1.1754944e-38, %v1464
        %v1466 = vsel %vm1463, %v1465, %v1461
        %v1467 = vmul.f32 1.0, %v1466
        %v1468 = vrcp.pop %v1432
        %v1469 = vmul.f32 %v1432, %v1468
        %v1470 = vsub.f32 1.0, %v1469
        %v1471 = vmul.f32 %v1468, %v1470
        %v1472 = vadd.f32 %v1468, %v1471
        %vm1473 = vweird.f32 %v1432
        %vm1474 = vweird.f32 %v1468
        %vm1475 = vmor %vm1473, %vm1474
        %v1476 = vsel %vm1475, %v1468, %v1472
        %v1477 = vand.u32 2147483647, %v1432
        %vm1478 = vcmp.eq.f32.partialorder %v1477, 8.507059e+37
        %v1479 = vand.u32 %v1432, 2147483648
        %v1480 = vor.u32 1.1754944e-38, %v1479
        %v1481 = vsel %vm1478, %v1480, %v1476
        %v1482 = vmul.f32 1.0, %v1481
        %v1483 = vrcp.pop %v1433
        %v1484 = vmul.f32 %v1433, %v1483
        %v1485 = vsub.f32 1.0, %v1484
        %v1486 = vmul.f32 %v1483, %v1485
        %v1487 = vadd.f32 %v1483, %v1486
        %vm1488 = vweird.f32 %v1433
        %vm1489 = vweird.f32 %v1483
        %vm1490 = vmor %vm1488, %vm1489
        %v1491 = vsel %vm1490, %v1483, %v1487
        %v1492 = vand.u32 2147483647, %v1433
        %vm1493 = vcmp.eq.f32.partialorder %v1492, 8.507059e+37
        %v1494 = vand.u32 %v1433, 2147483648
        %v1495 = vor.u32 1.1754944e-38, %v1494
        %v1496 = vsel %vm1493, %v1495, %v1491
        %v1497 = vmul.f32 1.0, %v1496
        %v1498 = vrcp.pop %v1434
        %v1499 = vmul.f32 %v1434, %v1498
        %v1500 = vsub.f32 1.0, %v1499
        %v1501 = vmul.f32 %v1498, %v1500
        %v1502 = vadd.f32 %v1498, %v1501
        %vm1503 = vweird.f32 %v1434
        %vm1504 = vweird.f32 %v1498
        %vm1505 = vmor %vm1503, %vm1504
        %v1506 = vsel %vm1505, %v1498, %v1502
        %v1507 = vand.u32 2147483647, %v1434
        %vm1508 = vcmp.eq.f32.partialorder %v1507, 8.507059e+37
        %v1509 = vand.u32 %v1434, 2147483648
        %v1510 = vor.u32 1.1754944e-38, %v1509
        %v1511 = vsel %vm1508, %v1510, %v1506
        %v1512 = vmul.f32 1.0, %v1511
        %v1513 = vrcp.pop %v1435
        %v1514 = vmul.f32 %v1435, %v1513
        %v1515 = vsub.f32 1.0, %v1514
        %v1516 = vmul.f32 %v1513, %v1515
        %v1517 = vadd.f32 %v1513, %v1516
        %vm1518 = vweird.f32 %v1435
        %vm1519 = vweird.f32 %v1513
        %vm1520 = vmor %vm1518, %vm1519
        %v1521 = vsel %vm1520, %v1513, %v1517
        %v1522 = vand.u32 2147483647, %v1435
        %vm1523 = vcmp.eq.f32.partialorder %v1522, 8.507059e+37
        %v1524 = vand.u32 %v1435, 2147483648
        %v1525 = vor.u32 1.1754944e-38, %v1524
        %v1526 = vsel %vm1523, %v1525, %v1521
        %v1527 = vmul.f32 1.0, %v1526
        %v1528 = vrcp.pop %v1436
        %v1529 = vmul.f32 %v1436, %v1528
        %v1530 = vsub.f32 1.0, %v1529
        %v1531 = vmul.f32 %v1528, %v1530
        %v1532 = vadd.f32 %v1528, %v1531
        %vm1533 = vweird.f32 %v1436
        %vm1534 = vweird.f32 %v1528
        %vm1535 = vmor %vm1533, %vm1534
        %v1536 = vsel %vm1535, %v1528, %v1532
        %v1537 = vand.u32 2147483647, %v1436
        %vm1538 = vcmp.eq.f32.partialorder %v1537, 8.507059e+37
        %v1539 = vand.u32 %v1436, 2147483648
        %v1540 = vor.u32 1.1754944e-38, %v1539
        %v1541 = vsel %vm1538, %v1540, %v1536
        %v1542 = vmul.f32 1.0, %v1541
        %v1543 = vrcp.pop %v1437
        %v1544 = vmul.f32 %v1437, %v1543
        %v1545 = vsub.f32 1.0, %v1544
        %v1546 = vmul.f32 %v1543, %v1545
        %v1547 = vadd.f32 %v1543, %v1546
        %vm1548 = vweird.f32 %v1437
        %vm1549 = vweird.f32 %v1543
        %vm1550 = vmor %vm1548, %vm1549
        %v1551 = vsel %vm1550, %v1543, %v1547
        %v1552 = vand.u32 2147483647, %v1437
        %vm1553 = vcmp.eq.f32.partialorder %v1552, 8.507059e+37
        %v1554 = vand.u32 %v1437, 2147483648
        %v1555 = vor.u32 1.1754944e-38, %v1554
        %v1556 = vsel %vm1553, %v1555, %v1551
        %v1557 = vmul.f32 1.0, %v1556
        %v1566 = vrot.slane %v1467, 7
        %v1567 = vrot.slane %v1482, 6
        %v1568 = vrot.slane %v1497, 5
        %v1569 = vrot.slane %v1512, 4
        %v1570 = vrot.slane %v1527, 3
        %v1571 = vrot.slane %v1542, 2
        %v1572 = vrot.slane %v1557, 1
        %vm1573 = vcmask 1040384
        %v1574 = vsel %vm1573, %v1452, %v1566
        %vm1575 = vcmask 1042434
        %v1576 = vsel %vm1575, %v1567, %v1568
        %vm1577 = vcmask 1041408
        %v1578 = vsel %vm1577, %v1574, %v1576
        %vm1579 = vcmask 1044484
        %v1580 = vsel %vm1579, %v1569, %v1570
        %vm1581 = vcmask 1046534
        %v1582 = vsel %vm1581, %v1571, %v1572
        %vm1583 = vcmask 1045508
        %v1584 = vsel %vm1583, %v1580, %v1582
        %vm1585 = vcmask 1043456
        %v1586 = vsel %vm1585, %v1578, %v1584
        %1588 = vst [vmem:[%s273] sm:$0xff] %v1586
        %s1589 = sand.u32 %s164, 1
        %s1590 = scalar_lea.sflag [#allocation5], %s1589
        %s1591 = sand.u32 %s164, 1
        %s1592 = smul.addr %s1591, 8
        %s1593 = scalar_lea.vmem [#allocation6], %s1592
        // Predicated region
        $region49: #{tpu_custom_call.1} parent=43 // pred_check
          %p1594 = pneg %p174
        $region50: #{tpu_custom_call.1} parent=43 // pred_check_branch
          %1596 = sbr.rel (%p1594) target = $region52
        $region51: #{tpu_custom_call.1} parent=43 // pred_region
          %s1597 = smul.u32 8, %s25
          %1599 = vsyncadd %s1590, 0
          %s1600 = scalar_lea.hbm %s6, %s1597
          %s1602 = sshll.u32 %s1593, 4
          %s1603 = int_to_ptr.vmem [resolvable:$true] %s1602
          %s1604 = sshll.u32 %s1600, 4
          %s1605 = int_to_ptr.hbm [resolvable:$true] %s1604
          %1607 = dma.vmem_to_hbm [thread:$0]  %s1603, 128, %s1605, %s1590
        $region52: #{tpu_custom_call.1} parent=43 // pred_fallthru
          _
      $region44: #{tpu_custom_call.1} parent=5 // pred_fallthru
        _
      %p1608 = scmp.le.s32.totalorder 2, %s20
      // Predicated region
      $region53: #{tpu_custom_call.1} parent=5 // pred_check
        %p1609 = pneg %p1608
      $region54: #{tpu_custom_call.1} parent=5 // pred_check_branch
        %1611 = sbr.rel (%p1609) target = $region56
      $region55: #{tpu_custom_call.1} parent=5 // pred_region
        %s1612 = ssub.s32 %s20, 2
        // Predicated region
        $region57: #{tpu_custom_call.1} parent=55 // pred_check
          %p1613 = pneg %p180
        $region58: #{tpu_custom_call.1} parent=55 // pred_check_branch
          %1615 = sbr.rel (%p1613) target = $region60
        $region59: #{tpu_custom_call.1} parent=55 // pred_region
          %s1616 = sand.u32 %s165, 1
          %s1617 = scalar_lea.sflag [#allocation5], %s1616
          %s1618 = sand.u32 %s165, 1
          %s1619 = smul.addr %s1618, 8
          %s1620 = scalar_lea.vmem [#allocation6], %s1619
          %1622 = dma.done %s1617, 128
        $region60: #{tpu_custom_call.1} parent=55 // pred_fallthru
          _
      $region56: #{tpu_custom_call.1} parent=5 // pred_fallthru
        _
    $region6: #{tpu_custom_call.1} parent=1 // loop_footer
      %s24 = sadd.s32 1, %s20
    $region7: #{tpu_custom_call.1} parent=1 // loop_footer_branch
      %19 = sbr.rel target = $region3
    $region8: #{tpu_custom_call.1} parent=1 // loop_exit
      _
    %1623 = vsyncpa [#allocation4], 1
    %s1624 = scalar_lea.sflag [#allocation4], 1
    %1625 = vsyncpa %s1624, 1
    %1626 = vsyncpa [#allocation5], 1
    %s1627 = scalar_lea.sflag [#allocation5], 1
    %1628 = vsyncpa %s1627, 1

</llo_original>
